<compile_context>
chip_gen: v5e
topology: v5e:2x2
jax: 0.10.0
libtpu: 0.0.40
codegen_flags: <defaults>
</compile_context>

<pallas_src>
import functools
import math

import jax
import jax.numpy as jnp
from jax.experimental import pallas as pl
from jax.experimental.pallas import tpu as pltpu


def _augru_kernel(x_ref, a_ref, h0_ref, wi_ref, bi_ref, whh_ref, bhh_ref,
                  out_ref, h_last_ref, h_scratch, gi_scratch,
                  *, t_blk, hp, rem):
    """One (batch-tile, time-block) grid step of the AUGRU recurrence.

    x_ref     : (t_blk, tb, I)    raw inputs (time-major) for this block
    a_ref     : (t_blk, tb, 1)    attention weights for this block
    h0_ref    : (tb, Hp)          initial hidden state for this batch tile
    wi_ref    : (I, 3*Hp)         merged input weights  [W_ir^T | W_iz^T | W_in^T]
    bi_ref    : (1, 3*Hp)         folded input biases   [b_ir+b_hr | b_iz+b_hz | b_in]
    whh_ref   : (Hp, 3*Hp)        merged hidden weights [W_hr^T | W_hz^T | W_hn^T]
    bhh_ref   : (1, 3*Hp)         hidden bias (b_hn in the n slot, zeros elsewhere)
    out_ref   : (t_blk, tb, Hp)   per-step hidden states, time-major
    h_last_ref: (tb, Hp)          final hidden state (written on last time block)
    h_scratch : (tb, Hp) f32      hidden state carried across time blocks
    gi_scratch: (t_blk*tb, 3*Hp)  per-block input projections
    """
    tt = pl.program_id(1)                       # time-block index (serial axis)
    nt = pl.num_programs(1)
    tb = h_scratch.shape[0]

    @pl.when(tt == 0)
    def _init():
        h_scratch[...] = h0_ref[...].astype(jnp.float32)

    # Fused, time-independent input projection for the whole block: a single
    # MXU matmul with no dependency on h, parked in a VMEM scratch slab.
    xin = x_ref[...].astype(jnp.float32).reshape(t_blk * tb, x_ref.shape[2])
    gi_scratch[...] = (
        jnp.dot(xin, wi_ref[...], preferred_element_type=jnp.float32)
        + bi_ref[...])

    b_hh = bhh_ref[...]                         # (1, 3*Hp): b_hn sits in the n slot
    last_block = tt == nt - 1
    h = h_scratch[...]

    # Fully-unrolled inner loop over the time block: static indices everywhere.
    for i in range(t_blk):
        gi_t = gi_scratch[pl.ds(i * tb, tb), :]          # (tb, 3*Hp), lane-dense
        a_t = a_ref[i]                                   # (tb, 1)

        # Single merged hidden matmul (weight re-read from VMEM each iter).
        gh = jnp.dot(h, whh_ref[...], preferred_element_type=jnp.float32) + b_hh

        # sigmoid(x) = 0.5*tanh(0.5*x) + 0.5  (one EUP op, no divide)
        rz = 0.5 * jnp.tanh(0.5 * (gi_t[:, :2 * hp] + gh[:, :2 * hp])) + 0.5
        r = rz[:, :hp]
        z = a_t * rz[:, hp:]                             # AUGRU: attention scales z
        n = jnp.tanh(gi_t[:, 2 * hp:] + r * gh[:, 2 * hp:])
        h_new = (1.0 - z) * n + z * h

        if i >= rem:        # static: only these steps can be sequence padding
            h_new = jnp.where(last_block, h, h_new)
        h = h_new

        out_ref[i] = h.astype(out_ref.dtype)             # dense (tb, Hp) store

    h_scratch[...] = h

    @pl.when(last_block)
    def _finalize():
        h_last_ref[...] = h.astype(h_last_ref.dtype)


def _round_up(v, m):
    return ((v + m - 1) // m) * m


def _vmem_bytes(t_blk, tb, hp, in_dim, out_itemsize):
    """Rough double-buffered VMEM working-set estimate for the kernel."""
    db = 2  # pipeline double-buffering
    ins = (t_blk * tb * in_dim          # x block
           + t_blk * tb * 1             # attention block
           + tb * hp                    # h0
           + in_dim * 3 * hp            # W_i^T (merged)
           + 3 * hp                     # folded input bias
           + hp * 3 * hp                # W_h^T (merged)
           + 3 * hp) * 4 * db           # hidden bias
    outs = (t_blk * tb * hp + tb * hp) * out_itemsize * db
    scratch = (tb * hp + t_blk * tb * 3 * hp) * 4
    return ins + outs + scratch


def augru_forward(x, attn,
                  w_ir, w_iz, w_in, w_hr, w_hz, w_hn,
                  b_ir, b_iz, b_in, b_hr, b_hz, b_hn,
                  h0=None, *, block_t=32, batch_tiles=None):
    """AUGRU over a batch_first sequence, applying AUGRUCell.forward per step.

    x    : (B, L, I)   inputs
    attn : (L, B)      attention weight per step (the module's `weight.view(-1, 1)`)
    w_i* : (H, I), w_h*: (H, H), b_*: (H,)
    h0   : (B, H) or None (zeros)
    Returns (output (B, L, H), h_last (B, H)).
    """
    # TODO(synk): the original module declares w_hr/w_hz/w_hn as
    # Linear(input_size, hidden_size) applied to `hidden`, which only works when
    # input_size == hidden_size; we take (H, H) hidden weights (equivalent there).
    B, L, I = x.shape
    H = w_ir.shape[0]
    dtype = x.dtype
    f32 = jnp.float32

    if h0 is None:
        h0 = jnp.zeros((B, H), dtype=dtype)

    # ---- Lane/sublane-aligned padded sizes ---------------------------------
    Hp = _round_up(H, 128)          # lane-dense gates; r/z/n slices vreg-aligned
    Bp = _round_up(B, 8)            # sublane-aligned batch rows

    if batch_tiles is None:
        # Two batch tiles -> the "parallel" grid axis can shard across v7x's
        # two TensorCores; single-TC chips (v5e/v6e) just run them serially.
        batch_tiles = 2 if (Bp >= 16 and Bp % 16 == 0) else 1
    nb = batch_tiles
    tb = Bp // nb
    assert Bp % nb == 0 and tb % 8 == 0, (Bp, nb, tb)

    out_itemsize = jnp.dtype(dtype).itemsize

    # ---- Time-block size under a conservative VMEM budget ------------------
    # (v7x has 64 MiB physical VMEM; v6e/v5e have 128 MiB and could go larger.)
    t_blk = max(8, _round_up(min(block_t, L), 8))
    vmem_budget = 20 * 1024 * 1024
    while t_blk > 8 and _vmem_bytes(t_blk, tb, Hp, I, out_itemsize) > vmem_budget:
        t_blk -= 8
    nt = (L + t_blk - 1) // t_blk
    Lp = nt * t_blk
    rem = L - (nt - 1) * t_blk      # valid steps in the last time block

    # ---- Merged + zero-padded parameters (padded lanes stay inert) ---------
    def pad_cols(wT):               # (., H) -> (., Hp)
        return jnp.pad(wT.astype(f32), ((0, 0), (0, Hp - H)))

    w_i_t = jnp.concatenate(
        [pad_cols(w_ir.T), pad_cols(w_iz.T), pad_cols(w_in.T)], axis=1)   # (I, 3*Hp)
    w_hh_t = jnp.concatenate(
        [jnp.pad(w.T.astype(f32), ((0, Hp - H), (0, Hp - H)))
         for w in (w_hr, w_hz, w_hn)], axis=1)                            # (Hp, 3*Hp)

    def pad_b(b):
        return jnp.pad(b.astype(f32), (0, Hp - H))

    b_i = jnp.concatenate(
        [pad_b(b_ir + b_hr), pad_b(b_iz + b_hz), pad_b(b_in)]).reshape(1, 3 * Hp)
    b_hh = jnp.concatenate(
        [jnp.zeros((2 * Hp,), f32), pad_b(b_hn)]).reshape(1, 3 * Hp)

    # ---- Time-major, padded activations -------------------------------------
    x_tm = jnp.pad(jnp.transpose(x, (1, 0, 2)).astype(f32),
                   ((0, Lp - L), (0, Bp - B), (0, 0)))                    # (Lp, Bp, I)
    a_tm = jnp.pad(attn.astype(f32).reshape(L, B, 1),
                   ((0, Lp - L), (0, Bp - B), (0, 0)))                    # (Lp, Bp, 1)
    h0_p = jnp.pad(h0.astype(f32), ((0, Bp - B), (0, Hp - H)))            # (Bp, Hp)

    kernel = functools.partial(_augru_kernel, t_blk=t_blk, hp=Hp, rem=rem)

    cost = pl.CostEstimate(
        flops=2 * Bp * Lp * 3 * Hp * (I + Hp) + 15 * Bp * Lp * Hp,
        transcendentals=3 * Bp * Lp * Hp,
        bytes_accessed=(4 * (x_tm.size + a_tm.size + h0_p.size + w_i_t.size
                             + w_hh_t.size + b_i.size + b_hh.size)
                        + out_itemsize * (Lp * Bp * Hp + Bp * Hp)),
    )

    vmem_limit = int(min(max(2 * _vmem_bytes(t_blk, tb, Hp, I, out_itemsize)
                             + (1 << 20), 32 << 20), 64 << 20))

    out_tm, h_last = pl.pallas_call(
        kernel,
        out_shape=(
            jax.ShapeDtypeStruct((Lp, Bp, Hp), dtype),     # time-major hidden states
            jax.ShapeDtypeStruct((Bp, Hp), dtype),         # final hidden state
        ),
        grid_spec=pltpu.PrefetchScalarGridSpec(
            num_scalar_prefetch=0,
            grid=(nb, nt),                                 # batch tiles x time blocks
            in_specs=[
                pl.BlockSpec((t_blk, tb, I), lambda b, t: (t, b, 0)),   # x (time-major)
                pl.BlockSpec((t_blk, tb, 1), lambda b, t: (t, b, 0)),   # attention
                pl.BlockSpec((tb, Hp), lambda b, t: (b, 0)),            # h0 (resident)
                pl.BlockSpec((I, 3 * Hp), lambda b, t: (0, 0)),         # W_i^T merged
                pl.BlockSpec((1, 3 * Hp), lambda b, t: (0, 0)),         # folded input bias
                pl.BlockSpec((Hp, 3 * Hp), lambda b, t: (0, 0)),        # W_h^T merged
                pl.BlockSpec((1, 3 * Hp), lambda b, t: (0, 0)),         # b_hh (b_hn slot)
            ],
            out_specs=[
                pl.BlockSpec((t_blk, tb, Hp), lambda b, t: (t, b, 0)),  # out, time-major
                pl.BlockSpec((tb, Hp), lambda b, t: (b, 0)),            # h_last
            ],
            scratch_shapes=[
                pltpu.VMEM((tb, Hp), jnp.float32),                # carried hidden state
                pltpu.VMEM((t_blk * tb, 3 * Hp), jnp.float32),    # per-block gi slab
            ],
        ),
        compiler_params=pltpu.CompilerParams(
            dimension_semantics=("parallel", "arbitrary"),  # batch parallel, time serial
            vmem_limit_bytes=vmem_limit,
        ),
        cost_estimate=cost,
    )(x_tm, a_tm, h0_p, w_i_t, b_i, w_hh_t, b_hh)

    out = jnp.transpose(out_tm, (1, 0, 2))[:B, :L, :H]     # one bulk transpose in XLA
    return out, h_last[:B, :H]


def augru_reference(x, attn,
                    w_ir, w_iz, w_in, w_hr, w_hz, w_hn,
                    b_ir, b_iz, b_in, b_hr, b_hz, b_hn, h0):
    """Pure-JAX reference: the PyTorch AUGRUCell.forward applied per step via scan."""
    def step(h, inp):
        x_t, a_t = inp
        r = jax.nn.sigmoid(x_t @ w_ir.T + b_ir + h @ w_hr.T + b_hr)
        z = jax.nn.sigmoid(x_t @ w_iz.T + b_iz + h @ w_hz.T + b_hz)
        z = a_t[:, None] * z
        n = jnp.tanh(x_t @ w_in.T + b_in + r * (h @ w_hn.T + b_hn))
        h_new = (1.0 - z) * n + z * h
        return h_new, h_new

    h_last, outs = jax.lax.scan(step, h0, (jnp.transpose(x, (1, 0, 2)), attn))
    return jnp.transpose(outs, (1, 0, 2)), h_last


if __name__ == "__main__":
    # Small shapes; I == H as the module's hidden-side Linears require.
    # B=16 exercises two batch tiles (megacore path); L=20 with block_t=8
    # exercises multi-block time grid + last-block padding; H=32 exercises the
    # H->128 lane padding.
    B, L, I, H = 16, 20, 32, 32

    key = jax.random.PRNGKey(0)
    ks = jax.random.split(key, 15)
    x = jax.random.normal(ks[0], (B, L, I), dtype=jnp.float32)
    attn = jax.random.uniform(ks[1], (L, B), dtype=jnp.float32)     # attention in [0, 1)
    h0 = jax.random.normal(ks[2], (B, H), dtype=jnp.float32)

    bound = 1.0 / math.sqrt(H)

    def u(k, shape):
        return jax.random.uniform(k, shape, minval=-bound, maxval=bound, dtype=jnp.float32)

    w_ir, w_iz, w_in = u(ks[3], (H, I)), u(ks[4], (H, I)), u(ks[5], (H, I))
    w_hr, w_hz, w_hn = u(ks[6], (H, H)), u(ks[7], (H, H)), u(ks[8], (H, H))
    b_ir, b_iz, b_in = u(ks[9], (H,)), u(ks[10], (H,)), u(ks[11], (H,))
    b_hr, b_hz, b_hn = u(ks[12], (H,)), u(ks[13], (H,)), u(ks[14], (H,))

    out, h_last = augru_forward(x, attn, w_ir, w_iz, w_in, w_hr, w_hz, w_hn,
                                b_ir, b_iz, b_in, b_hr, b_hz, b_hn, h0,
                                block_t=8)
    jax.block_until_ready((out, h_last))

    out_ref, h_ref = augru_reference(x, attn, w_ir, w_iz, w_in, w_hr, w_hz, w_hn,
                                     b_ir, b_iz, b_in, b_hr, b_hz, b_hn, h0)
    assert out.shape == (B, L, H) and h_last.shape == (B, H)
    # In-kernel sigmoid uses the exact identity 0.5*tanh(0.5*x)+0.5; the ~1 ulp
    # per-step rounding difference vs jax.nn.sigmoid accumulates to ~1e-6 over
    # the recurrence, so the tolerance is set slightly above 1e-5.
    max_err = float(jnp.max(jnp.abs(out - out_ref)))
    assert jnp.allclose(out, out_ref, atol=2e-5, rtol=2e-5), max_err
    assert jnp.allclose(h_last, h_ref, atol=2e-5, rtol=2e-5), \
        float(jnp.max(jnp.abs(h_last - h_ref)))

    print("KERNEL_OK")
</pallas_src>

<mosaic_0001>
module attributes {stable_mosaic.version = 11 : i64} {
  func.func @_augru_kernel(%arg0: i32, %arg1: i32, %arg2: memref<8x8x32xf32, #tpu.memory_space<vmem>>, %arg3: memref<8x8x1xf32, #tpu.memory_space<vmem>>, %arg4: memref<8x128xf32, #tpu.memory_space<vmem>>, %arg5: memref<32x384xf32, #tpu.memory_space<vmem>>, %arg6: memref<1x384xf32, #tpu.memory_space<vmem>>, %arg7: memref<128x384xf32, #tpu.memory_space<vmem>>, %arg8: memref<1x384xf32, #tpu.memory_space<vmem>>, %arg9: memref<8x8x128xf32, #tpu.memory_space<vmem>>, %arg10: memref<8x128xf32, #tpu.memory_space<vmem>>, %arg11: memref<8x128xf32, #tpu.memory_space<vmem>>, %arg12: memref<64x384xf32, #tpu.memory_space<vmem>>) attributes {dimension_semantics = [#tpu.dimension_semantics<parallel>, #tpu.dimension_semantics<arbitrary>], iteration_bounds = array<i64: 2, 3>, scalar_prefetch = 0 : i64, scratch_operands = 2 : i64, tpu.core_type = #tpu.core_type<tc>, window_params = [{transform_indices = @transform_0, window_bounds = array<i64: 8, 8, 32>}, {transform_indices = @transform_1, window_bounds = array<i64: 8, 8, 1>}, {transform_indices = @transform_2, window_bounds = array<i64: 8, 128>}, {pipeline_mode = #tpu.pipeline_mode<synchronous>, transform_indices = @transform_3, window_bounds = array<i64: 32, 384>}, {pipeline_mode = #tpu.pipeline_mode<synchronous>, transform_indices = @transform_4, window_bounds = array<i64: 1, 384>}, {pipeline_mode = #tpu.pipeline_mode<synchronous>, transform_indices = @transform_5, window_bounds = array<i64: 128, 384>}, {pipeline_mode = #tpu.pipeline_mode<synchronous>, transform_indices = @transform_6, window_bounds = array<i64: 1, 384>}, {transform_indices = @transform_7, window_bounds = array<i64: 8, 8, 128>}, {transform_indices = @transform_8, window_bounds = array<i64: 8, 128>}]} {
    %c0_i32 = arith.constant 0 : i32
    %0 = arith.cmpi eq, %arg1, %c0_i32 : i32
    %1 = arith.extui %0 : i1 to i32
    %c0_i32_0 = arith.constant 0 : i32
    %2 = arith.cmpi ne, %1, %c0_i32_0 : i32
    scf.if %2 {
      %c0_122 = arith.constant 0 : index
      %c0_123 = arith.constant 0 : index
      %293 = vector.load %arg4[%c0_122, %c0_123] : memref<8x128xf32, #tpu.memory_space<vmem>>, vector<8x128xf32>
      %c0_124 = arith.constant 0 : index
      %c0_125 = arith.constant 0 : index
      %294 = vector.load %arg11[%c0_124, %c0_125] : memref<8x128xf32, #tpu.memory_space<vmem>>, vector<8x128xf32>
      tpu.vector_store %arg11[%c0_124, %c0_125], %293 {strides = array<i32>} : memref<8x128xf32, #tpu.memory_space<vmem>>, vector<8x128xf32>,
    } else {
    }
    %c0 = arith.constant 0 : index
    %c0_1 = arith.constant 0 : index
    %c0_2 = arith.constant 0 : index
    %3 = vector.load %arg2[%c0, %c0_1, %c0_2] : memref<8x8x32xf32, #tpu.memory_space<vmem>>, vector<8x8x32xf32>
    %4 = vector.shape_cast %3 : vector<8x8x32xf32> to vector<64x32xf32>
    %c0_3 = arith.constant 0 : index
    %c0_4 = arith.constant 0 : index
    %5 = vector.load %arg5[%c0_3, %c0_4] : memref<32x384xf32, #tpu.memory_space<vmem>>, vector<32x384xf32>
    %cst = arith.constant dense<0.000000e+00> : vector<64x384xf32>
    %6 = tpu.matmul %4, %5, %cst {dimension_numbers = #tpu.dot_dimension_numbers<[1], [0], [0], [1], [0, 0, 1, 1], [], []>} : vector<64x32xf32>, vector<32x384xf32>, vector<64x384xf32> -> vector<64x384xf32>
    %c0_5 = arith.constant 0 : index
    %c0_6 = arith.constant 0 : index
    %7 = vector.load %arg6[%c0_5, %c0_6] : memref<1x384xf32, #tpu.memory_space<vmem>>, vector<1x384xf32>
    %8 = vector.broadcast %7 : vector<1x384xf32> to vector<64x384xf32>
    %9 = arith.addf %6, %8 : vector<64x384xf32>
    %c0_7 = arith.constant 0 : index
    %c0_8 = arith.constant 0 : index
    %10 = vector.load %arg12[%c0_7, %c0_8] : memref<64x384xf32, #tpu.memory_space<vmem>>, vector<64x384xf32>
    tpu.vector_store %arg12[%c0_7, %c0_8], %9 {strides = array<i32>} : memref<64x384xf32, #tpu.memory_space<vmem>>, vector<64x384xf32>,
    %c0_9 = arith.constant 0 : index
    %c0_10 = arith.constant 0 : index
    %11 = vector.load %arg8[%c0_9, %c0_10] : memref<1x384xf32, #tpu.memory_space<vmem>>, vector<1x384xf32>
    %c2_i32 = arith.constant 2 : i32
    %12 = arith.cmpi eq, %arg1, %c2_i32 : i32
    %c0_11 = arith.constant 0 : index
    %c0_12 = arith.constant 0 : index
    %13 = vector.load %arg11[%c0_11, %c0_12] : memref<8x128xf32, #tpu.memory_space<vmem>>, vector<8x128xf32>
    %c0_13 = arith.constant 0 : index
    %c0_14 = arith.constant 0 : index
    %14 = vector.load %arg12[%c0_13, %c0_14] : memref<64x384xf32, #tpu.memory_space<vmem>>, vector<8x384xf32>
    %c0_15 = arith.constant 0 : index
    %c0_16 = arith.constant 0 : index
    %c0_17 = arith.constant 0 : index
    %15 = vector.load %arg3[%c0_15, %c0_16, %c0_17] : memref<8x8x1xf32, #tpu.memory_space<vmem>>, vector<1x8x1xf32>
    %16 = vector.shape_cast %15 : vector<1x8x1xf32> to vector<8x1xf32>
    %c0_18 = arith.constant 0 : index
    %c0_19 = arith.constant 0 : index
    %17 = vector.load %arg7[%c0_18, %c0_19] : memref<128x384xf32, #tpu.memory_space<vmem>>, vector<128x384xf32>
    %cst_20 = arith.constant dense<0.000000e+00> : vector<8x384xf32>
    %18 = tpu.matmul %13, %17, %cst_20 {dimension_numbers = #tpu.dot_dimension_numbers<[1], [0], [0], [1], [0, 0, 1, 1], [], []>} : vector<8x128xf32>, vector<128x384xf32>, vector<8x384xf32> -> vector<8x384xf32>
    %19 = vector.broadcast %11 : vector<1x384xf32> to vector<8x384xf32>
    %20 = arith.addf %18, %19 : vector<8x384xf32>
    %21 = vector.extract_strided_slice %14 {offsets = [0, 0], sizes = [8, 256], strides = [1, 1]} : vector<8x384xf32> to vector<8x256xf32>
    %22 = vector.extract_strided_slice %20 {offsets = [0, 0], sizes = [8, 256], strides = [1, 1]} : vector<8x384xf32> to vector<8x256xf32>
    %23 = arith.addf %21, %22 : vector<8x256xf32>
    %cst_21 = arith.constant 5.000000e-01 : f32
    %24 = vector.broadcast %cst_21 : f32 to vector<8x256xf32>
    %25 = arith.mulf %24, %23 : vector<8x256xf32>
    %26 = math.tanh %25 : vector<8x256xf32>
    %cst_22 = arith.constant 5.000000e-01 : f32
    %27 = vector.broadcast %cst_22 : f32 to vector<8x256xf32>
    %28 = arith.mulf %27, %26 : vector<8x256xf32>
    %cst_23 = arith.constant 5.000000e-01 : f32
    %29 = vector.broadcast %cst_23 : f32 to vector<8x256xf32>
    %30 = arith.addf %28, %29 : vector<8x256xf32>
    %31 = vector.extract_strided_slice %30 {offsets = [0, 0], sizes = [8, 128], strides = [1, 1]} : vector<8x256xf32> to vector<8x128xf32>
    %32 = vector.extract_strided_slice %30 {offsets = [0, 128], sizes = [8, 128], strides = [1, 1]} : vector<8x256xf32> to vector<8x128xf32>
    %33 = vector.broadcast %16 : vector<8x1xf32> to vector<8x128xf32>
    %34 = arith.mulf %33, %32 : vector<8x128xf32>
    %35 = vector.extract_strided_slice %14 {offsets = [0, 256], sizes = [8, 128], strides = [1, 1]} : vector<8x384xf32> to vector<8x128xf32>
    %36 = vector.extract_strided_slice %20 {offsets = [0, 256], sizes = [8, 128], strides = [1, 1]} : vector<8x384xf32> to vector<8x128xf32>
    %37 = arith.mulf %31, %36 : vector<8x128xf32>
    %38 = arith.addf %35, %37 : vector<8x128xf32>
    %39 = math.tanh %38 : vector<8x128xf32>
    %cst_24 = arith.constant 1.000000e+00 : f32
    %40 = vector.broadcast %cst_24 : f32 to vector<8x128xf32>
    %41 = arith.subf %40, %34 : vector<8x128xf32>
    %42 = arith.mulf %41, %39 : vector<8x128xf32>
    %43 = arith.mulf %34, %13 : vector<8x128xf32>
    %44 = arith.addf %42, %43 : vector<8x128xf32>
    %c0_25 = arith.constant 0 : index
    %c0_26 = arith.constant 0 : index
    %c0_27 = arith.constant 0 : index
    %45 = vector.load %arg9[%c0_25, %c0_26, %c0_27] : memref<8x8x128xf32, #tpu.memory_space<vmem>>, vector<1x8x128xf32>
    %46 = vector.shape_cast %45 : vector<1x8x128xf32> to vector<8x128xf32>
    %47 = vector.shape_cast %44 : vector<8x128xf32> to vector<1x8x128xf32>
    tpu.vector_store %arg9[%c0_25, %c0_26, %c0_27], %47 {strides = array<i32>} : memref<8x8x128xf32, #tpu.memory_space<vmem>>, vector<1x8x128xf32>,
    %c8 = arith.constant 8 : index
    %c0_28 = arith.constant 0 : index
    %48 = vector.load %arg12[%c8, %c0_28] : memref<64x384xf32, #tpu.memory_space<vmem>>, vector<8x384xf32>
    %c1 = arith.constant 1 : index
    %c0_29 = arith.constant 0 : index
    %c0_30 = arith.constant 0 : index
    %49 = vector.load %arg3[%c1, %c0_29, %c0_30] : memref<8x8x1xf32, #tpu.memory_space<vmem>>, vector<1x8x1xf32>
    %50 = vector.shape_cast %49 : vector<1x8x1xf32> to vector<8x1xf32>
    %c0_31 = arith.constant 0 : index
    %c0_32 = arith.constant 0 : index
    %51 = vector.load %arg7[%c0_31, %c0_32] : memref<128x384xf32, #tpu.memory_space<vmem>>, vector<128x384xf32>
    %cst_33 = arith.constant dense<0.000000e+00> : vector<8x384xf32>
    %52 = tpu.matmul %44, %51, %cst_33 {dimension_numbers = #tpu.dot_dimension_numbers<[1], [0], [0], [1], [0, 0, 1, 1], [], []>} : vector<8x128xf32>, vector<128x384xf32>, vector<8x384xf32> -> vector<8x384xf32>
    %53 = vector.broadcast %11 : vector<1x384xf32> to vector<8x384xf32>
    %54 = arith.addf %52, %53 : vector<8x384xf32>
    %55 = vector.extract_strided_slice %48 {offsets = [0, 0], sizes = [8, 256], strides = [1, 1]} : vector<8x384xf32> to vector<8x256xf32>
    %56 = vector.extract_strided_slice %54 {offsets = [0, 0], sizes = [8, 256], strides = [1, 1]} : vector<8x384xf32> to vector<8x256xf32>
    %57 = arith.addf %55, %56 : vector<8x256xf32>
    %cst_34 = arith.constant 5.000000e-01 : f32
    %58 = vector.broadcast %cst_34 : f32 to vector<8x256xf32>
    %59 = arith.mulf %58, %57 : vector<8x256xf32>
    %60 = math.tanh %59 : vector<8x256xf32>
    %cst_35 = arith.constant 5.000000e-01 : f32
    %61 = vector.broadcast %cst_35 : f32 to vector<8x256xf32>
    %62 = arith.mulf %61, %60 : vector<8x256xf32>
    %cst_36 = arith.constant 5.000000e-01 : f32
    %63 = vector.broadcast %cst_36 : f32 to vector<8x256xf32>
    %64 = arith.addf %62, %63 : vector<8x256xf32>
    %65 = vector.extract_strided_slice %64 {offsets = [0, 0], sizes = [8, 128], strides = [1, 1]} : vector<8x256xf32> to vector<8x128xf32>
    %66 = vector.extract_strided_slice %64 {offsets = [0, 128], sizes = [8, 128], strides = [1, 1]} : vector<8x256xf32> to vector<8x128xf32>
    %67 = vector.broadcast %50 : vector<8x1xf32> to vector<8x128xf32>
    %68 = arith.mulf %67, %66 : vector<8x128xf32>
    %69 = vector.extract_strided_slice %48 {offsets = [0, 256], sizes = [8, 128], strides = [1, 1]} : vector<8x384xf32> to vector<8x128xf32>
    %70 = vector.extract_strided_slice %54 {offsets = [0, 256], sizes = [8, 128], strides = [1, 1]} : vector<8x384xf32> to vector<8x128xf32>
    %71 = arith.mulf %65, %70 : vector<8x128xf32>
    %72 = arith.addf %69, %71 : vector<8x128xf32>
    %73 = math.tanh %72 : vector<8x128xf32>
    %cst_37 = arith.constant 1.000000e+00 : f32
    %74 = vector.broadcast %cst_37 : f32 to vector<8x128xf32>
    %75 = arith.subf %74, %68 : vector<8x128xf32>
    %76 = arith.mulf %75, %73 : vector<8x128xf32>
    %77 = arith.mulf %68, %44 : vector<8x128xf32>
    %78 = arith.addf %76, %77 : vector<8x128xf32>
    %c1_38 = arith.constant 1 : index
    %c0_39 = arith.constant 0 : index
    %c0_40 = arith.constant 0 : index
    %79 = vector.load %arg9[%c1_38, %c0_39, %c0_40] : memref<8x8x128xf32, #tpu.memory_space<vmem>>, vector<1x8x128xf32>
    %80 = vector.shape_cast %79 : vector<1x8x128xf32> to vector<8x128xf32>
    %81 = vector.shape_cast %78 : vector<8x128xf32> to vector<1x8x128xf32>
    tpu.vector_store %arg9[%c1_38, %c0_39, %c0_40], %81 {strides = array<i32>} : memref<8x8x128xf32, #tpu.memory_space<vmem>>, vector<1x8x128xf32>,
    %c16 = arith.constant 16 : index
    %c0_41 = arith.constant 0 : index
    %82 = vector.load %arg12[%c16, %c0_41] : memref<64x384xf32, #tpu.memory_space<vmem>>, vector<8x384xf32>
    %c2 = arith.constant 2 : index
    %c0_42 = arith.constant 0 : index
    %c0_43 = arith.constant 0 : index
    %83 = vector.load %arg3[%c2, %c0_42, %c0_43] : memref<8x8x1xf32, #tpu.memory_space<vmem>>, vector<1x8x1xf32>
    %84 = vector.shape_cast %83 : vector<1x8x1xf32> to vector<8x1xf32>
    %c0_44 = arith.constant 0 : index
    %c0_45 = arith.constant 0 : index
    %85 = vector.load %arg7[%c0_44, %c0_45] : memref<128x384xf32, #tpu.memory_space<vmem>>, vector<128x384xf32>
    %cst_46 = arith.constant dense<0.000000e+00> : vector<8x384xf32>
    %86 = tpu.matmul %78, %85, %cst_46 {dimension_numbers = #tpu.dot_dimension_numbers<[1], [0], [0], [1], [0, 0, 1, 1], [], []>} : vector<8x128xf32>, vector<128x384xf32>, vector<8x384xf32> -> vector<8x384xf32>
    %87 = vector.broadcast %11 : vector<1x384xf32> to vector<8x384xf32>
    %88 = arith.addf %86, %87 : vector<8x384xf32>
    %89 = vector.extract_strided_slice %82 {offsets = [0, 0], sizes = [8, 256], strides = [1, 1]} : vector<8x384xf32> to vector<8x256xf32>
    %90 = vector.extract_strided_slice %88 {offsets = [0, 0], sizes = [8, 256], strides = [1, 1]} : vector<8x384xf32> to vector<8x256xf32>
    %91 = arith.addf %89, %90 : vector<8x256xf32>
    %cst_47 = arith.constant 5.000000e-01 : f32
    %92 = vector.broadcast %cst_47 : f32 to vector<8x256xf32>
    %93 = arith.mulf %92, %91 : vector<8x256xf32>
    %94 = math.tanh %93 : vector<8x256xf32>
    %cst_48 = arith.constant 5.000000e-01 : f32
    %95 = vector.broadcast %cst_48 : f32 to vector<8x256xf32>
    %96 = arith.mulf %95, %94 : vector<8x256xf32>
    %cst_49 = arith.constant 5.000000e-01 : f32
    %97 = vector.broadcast %cst_49 : f32 to vector<8x256xf32>
    %98 = arith.addf %96, %97 : vector<8x256xf32>
    %99 = vector.extract_strided_slice %98 {offsets = [0, 0], sizes = [8, 128], strides = [1, 1]} : vector<8x256xf32> to vector<8x128xf32>
    %100 = vector.extract_strided_slice %98 {offsets = [0, 128], sizes = [8, 128], strides = [1, 1]} : vector<8x256xf32> to vector<8x128xf32>
    %101 = vector.broadcast %84 : vector<8x1xf32> to vector<8x128xf32>
    %102 = arith.mulf %101, %100 : vector<8x128xf32>
    %103 = vector.extract_strided_slice %82 {offsets = [0, 256], sizes = [8, 128], strides = [1, 1]} : vector<8x384xf32> to vector<8x128xf32>
    %104 = vector.extract_strided_slice %88 {offsets = [0, 256], sizes = [8, 128], strides = [1, 1]} : vector<8x384xf32> to vector<8x128xf32>
    %105 = arith.mulf %99, %104 : vector<8x128xf32>
    %106 = arith.addf %103, %105 : vector<8x128xf32>
    %107 = math.tanh %106 : vector<8x128xf32>
    %cst_50 = arith.constant 1.000000e+00 : f32
    %108 = vector.broadcast %cst_50 : f32 to vector<8x128xf32>
    %109 = arith.subf %108, %102 : vector<8x128xf32>
    %110 = arith.mulf %109, %107 : vector<8x128xf32>
    %111 = arith.mulf %102, %78 : vector<8x128xf32>
    %112 = arith.addf %110, %111 : vector<8x128xf32>
    %c2_51 = arith.constant 2 : index
    %c0_52 = arith.constant 0 : index
    %c0_53 = arith.constant 0 : index
    %113 = vector.load %arg9[%c2_51, %c0_52, %c0_53] : memref<8x8x128xf32, #tpu.memory_space<vmem>>, vector<1x8x128xf32>
    %114 = vector.shape_cast %113 : vector<1x8x128xf32> to vector<8x128xf32>
    %115 = vector.shape_cast %112 : vector<8x128xf32> to vector<1x8x128xf32>
    tpu.vector_store %arg9[%c2_51, %c0_52, %c0_53], %115 {strides = array<i32>} : memref<8x8x128xf32, #tpu.memory_space<vmem>>, vector<1x8x128xf32>,
    %c24 = arith.constant 24 : index
    %c0_54 = arith.constant 0 : index
    %116 = vector.load %arg12[%c24, %c0_54] : memref<64x384xf32, #tpu.memory_space<vmem>>, vector<8x384xf32>
    %c3 = arith.constant 3 : index
    %c0_55 = arith.constant 0 : index
    %c0_56 = arith.constant 0 : index
    %117 = vector.load %arg3[%c3, %c0_55, %c0_56] : memref<8x8x1xf32, #tpu.memory_space<vmem>>, vector<1x8x1xf32>
    %118 = vector.shape_cast %117 : vector<1x8x1xf32> to vector<8x1xf32>
    %c0_57 = arith.constant 0 : index
    %c0_58 = arith.constant 0 : index
    %119 = vector.load %arg7[%c0_57, %c0_58] : memref<128x384xf32, #tpu.memory_space<vmem>>, vector<128x384xf32>
    %cst_59 = arith.constant dense<0.000000e+00> : vector<8x384xf32>
    %120 = tpu.matmul %112, %119, %cst_59 {dimension_numbers = #tpu.dot_dimension_numbers<[1], [0], [0], [1], [0, 0, 1, 1], [], []>} : vector<8x128xf32>, vector<128x384xf32>, vector<8x384xf32> -> vector<8x384xf32>
    %121 = vector.broadcast %11 : vector<1x384xf32> to vector<8x384xf32>
    %122 = arith.addf %120, %121 : vector<8x384xf32>
    %123 = vector.extract_strided_slice %116 {offsets = [0, 0], sizes = [8, 256], strides = [1, 1]} : vector<8x384xf32> to vector<8x256xf32>
    %124 = vector.extract_strided_slice %122 {offsets = [0, 0], sizes = [8, 256], strides = [1, 1]} : vector<8x384xf32> to vector<8x256xf32>
    %125 = arith.addf %123, %124 : vector<8x256xf32>
    %cst_60 = arith.constant 5.000000e-01 : f32
    %126 = vector.broadcast %cst_60 : f32 to vector<8x256xf32>
    %127 = arith.mulf %126, %125 : vector<8x256xf32>
    %128 = math.tanh %127 : vector<8x256xf32>
    %cst_61 = arith.constant 5.000000e-01 : f32
    %129 = vector.broadcast %cst_61 : f32 to vector<8x256xf32>
    %130 = arith.mulf %129, %128 : vector<8x256xf32>
    %cst_62 = arith.constant 5.000000e-01 : f32
    %131 = vector.broadcast %cst_62 : f32 to vector<8x256xf32>
    %132 = arith.addf %130, %131 : vector<8x256xf32>
    %133 = vector.extract_strided_slice %132 {offsets = [0, 0], sizes = [8, 128], strides = [1, 1]} : vector<8x256xf32> to vector<8x128xf32>
    %134 = vector.extract_strided_slice %132 {offsets = [0, 128], sizes = [8, 128], strides = [1, 1]} : vector<8x256xf32> to vector<8x128xf32>
    %135 = vector.broadcast %118 : vector<8x1xf32> to vector<8x128xf32>
    %136 = arith.mulf %135, %134 : vector<8x128xf32>
    %137 = vector.extract_strided_slice %116 {offsets = [0, 256], sizes = [8, 128], strides = [1, 1]} : vector<8x384xf32> to vector<8x128xf32>
    %138 = vector.extract_strided_slice %122 {offsets = [0, 256], sizes = [8, 128], strides = [1, 1]} : vector<8x384xf32> to vector<8x128xf32>
    %139 = arith.mulf %133, %138 : vector<8x128xf32>
    %140 = arith.addf %137, %139 : vector<8x128xf32>
    %141 = math.tanh %140 : vector<8x128xf32>
    %cst_63 = arith.constant 1.000000e+00 : f32
    %142 = vector.broadcast %cst_63 : f32 to vector<8x128xf32>
    %143 = arith.subf %142, %136 : vector<8x128xf32>
    %144 = arith.mulf %143, %141 : vector<8x128xf32>
    %145 = arith.mulf %136, %112 : vector<8x128xf32>
    %146 = arith.addf %144, %145 : vector<8x128xf32>
    %c3_64 = arith.constant 3 : index
    %c0_65 = arith.constant 0 : index
    %c0_66 = arith.constant 0 : index
    %147 = vector.load %arg9[%c3_64, %c0_65, %c0_66] : memref<8x8x128xf32, #tpu.memory_space<vmem>>, vector<1x8x128xf32>
    %148 = vector.shape_cast %147 : vector<1x8x128xf32> to vector<8x128xf32>
    %149 = vector.shape_cast %146 : vector<8x128xf32> to vector<1x8x128xf32>
    tpu.vector_store %arg9[%c3_64, %c0_65, %c0_66], %149 {strides = array<i32>} : memref<8x8x128xf32, #tpu.memory_space<vmem>>, vector<1x8x128xf32>,
    %c32 = arith.constant 32 : index
    %c0_67 = arith.constant 0 : index
    %150 = vector.load %arg12[%c32, %c0_67] : memref<64x384xf32, #tpu.memory_space<vmem>>, vector<8x384xf32>
    %c4 = arith.constant 4 : index
    %c0_68 = arith.constant 0 : index
    %c0_69 = arith.constant 0 : index
    %151 = vector.load %arg3[%c4, %c0_68, %c0_69] : memref<8x8x1xf32, #tpu.memory_space<vmem>>, vector<1x8x1xf32>
    %152 = vector.shape_cast %151 : vector<1x8x1xf32> to vector<8x1xf32>
    %c0_70 = arith.constant 0 : index
    %c0_71 = arith.constant 0 : index
    %153 = vector.load %arg7[%c0_70, %c0_71] : memref<128x384xf32, #tpu.memory_space<vmem>>, vector<128x384xf32>
    %cst_72 = arith.constant dense<0.000000e+00> : vector<8x384xf32>
    %154 = tpu.matmul %146, %153, %cst_72 {dimension_numbers = #tpu.dot_dimension_numbers<[1], [0], [0], [1], [0, 0, 1, 1], [], []>} : vector<8x128xf32>, vector<128x384xf32>, vector<8x384xf32> -> vector<8x384xf32>
    %155 = vector.broadcast %11 : vector<1x384xf32> to vector<8x384xf32>
    %156 = arith.addf %154, %155 : vector<8x384xf32>
    %157 = vector.extract_strided_slice %150 {offsets = [0, 0], sizes = [8, 256], strides = [1, 1]} : vector<8x384xf32> to vector<8x256xf32>
    %158 = vector.extract_strided_slice %156 {offsets = [0, 0], sizes = [8, 256], strides = [1, 1]} : vector<8x384xf32> to vector<8x256xf32>
    %159 = arith.addf %157, %158 : vector<8x256xf32>
    %cst_73 = arith.constant 5.000000e-01 : f32
    %160 = vector.broadcast %cst_73 : f32 to vector<8x256xf32>
    %161 = arith.mulf %160, %159 : vector<8x256xf32>
    %162 = math.tanh %161 : vector<8x256xf32>
    %cst_74 = arith.constant 5.000000e-01 : f32
    %163 = vector.broadcast %cst_74 : f32 to vector<8x256xf32>
    %164 = arith.mulf %163, %162 : vector<8x256xf32>
    %cst_75 = arith.constant 5.000000e-01 : f32
    %165 = vector.broadcast %cst_75 : f32 to vector<8x256xf32>
    %166 = arith.addf %164, %165 : vector<8x256xf32>
    %167 = vector.extract_strided_slice %166 {offsets = [0, 0], sizes = [8, 128], strides = [1, 1]} : vector<8x256xf32> to vector<8x128xf32>
    %168 = vector.extract_strided_slice %166 {offsets = [0, 128], sizes = [8, 128], strides = [1, 1]} : vector<8x256xf32> to vector<8x128xf32>
    %169 = vector.broadcast %152 : vector<8x1xf32> to vector<8x128xf32>
    %170 = arith.mulf %169, %168 : vector<8x128xf32>
    %171 = vector.extract_strided_slice %150 {offsets = [0, 256], sizes = [8, 128], strides = [1, 1]} : vector<8x384xf32> to vector<8x128xf32>
    %172 = vector.extract_strided_slice %156 {offsets = [0, 256], sizes = [8, 128], strides = [1, 1]} : vector<8x384xf32> to vector<8x128xf32>
    %173 = arith.mulf %167, %172 : vector<8x128xf32>
    %174 = arith.addf %171, %173 : vector<8x128xf32>
    %175 = math.tanh %174 : vector<8x128xf32>
    %cst_76 = arith.constant 1.000000e+00 : f32
    %176 = vector.broadcast %cst_76 : f32 to vector<8x128xf32>
    %177 = arith.subf %176, %170 : vector<8x128xf32>
    %178 = arith.mulf %177, %175 : vector<8x128xf32>
    %179 = arith.mulf %170, %146 : vector<8x128xf32>
    %180 = arith.addf %178, %179 : vector<8x128xf32>
    %181 = arith.select %12, %146, %180 : vector<8x128xf32>
    %c4_77 = arith.constant 4 : index
    %c0_78 = arith.constant 0 : index
    %c0_79 = arith.constant 0 : index
    %182 = vector.load %arg9[%c4_77, %c0_78, %c0_79] : memref<8x8x128xf32, #tpu.memory_space<vmem>>, vector<1x8x128xf32>
    %183 = vector.shape_cast %182 : vector<1x8x128xf32> to vector<8x128xf32>
    %184 = vector.shape_cast %181 : vector<8x128xf32> to vector<1x8x128xf32>
    tpu.vector_store %arg9[%c4_77, %c0_78, %c0_79], %184 {strides = array<i32>} : memref<8x8x128xf32, #tpu.memory_space<vmem>>, vector<1x8x128xf32>,
    %c40 = arith.constant 40 : index
    %c0_80 = arith.constant 0 : index
    %185 = vector.load %arg12[%c40, %c0_80] : memref<64x384xf32, #tpu.memory_space<vmem>>, vector<8x384xf32>
    %c5 = arith.constant 5 : index
    %c0_81 = arith.constant 0 : index
    %c0_82 = arith.constant 0 : index
    %186 = vector.load %arg3[%c5, %c0_81, %c0_82] : memref<8x8x1xf32, #tpu.memory_space<vmem>>, vector<1x8x1xf32>
    %187 = vector.shape_cast %186 : vector<1x8x1xf32> to vector<8x1xf32>
    %c0_83 = arith.constant 0 : index
    %c0_84 = arith.constant 0 : index
    %188 = vector.load %arg7[%c0_83, %c0_84] : memref<128x384xf32, #tpu.memory_space<vmem>>, vector<128x384xf32>
    %cst_85 = arith.constant dense<0.000000e+00> : vector<8x384xf32>
    %189 = tpu.matmul %181, %188, %cst_85 {dimension_numbers = #tpu.dot_dimension_numbers<[1], [0], [0], [1], [0, 0, 1, 1], [], []>} : vector<8x128xf32>, vector<128x384xf32>, vector<8x384xf32> -> vector<8x384xf32>
    %190 = vector.broadcast %11 : vector<1x384xf32> to vector<8x384xf32>
    %191 = arith.addf %189, %190 : vector<8x384xf32>
    %192 = vector.extract_strided_slice %185 {offsets = [0, 0], sizes = [8, 256], strides = [1, 1]} : vector<8x384xf32> to vector<8x256xf32>
    %193 = vector.extract_strided_slice %191 {offsets = [0, 0], sizes = [8, 256], strides = [1, 1]} : vector<8x384xf32> to vector<8x256xf32>
    %194 = arith.addf %192, %193 : vector<8x256xf32>
    %cst_86 = arith.constant 5.000000e-01 : f32
    %195 = vector.broadcast %cst_86 : f32 to vector<8x256xf32>
    %196 = arith.mulf %195, %194 : vector<8x256xf32>
    %197 = math.tanh %196 : vector<8x256xf32>
    %cst_87 = arith.constant 5.000000e-01 : f32
    %198 = vector.broadcast %cst_87 : f32 to vector<8x256xf32>
    %199 = arith.mulf %198, %197 : vector<8x256xf32>
    %cst_88 = arith.constant 5.000000e-01 : f32
    %200 = vector.broadcast %cst_88 : f32 to vector<8x256xf32>
    %201 = arith.addf %199, %200 : vector<8x256xf32>
    %202 = vector.extract_strided_slice %201 {offsets = [0, 0], sizes = [8, 128], strides = [1, 1]} : vector<8x256xf32> to vector<8x128xf32>
    %203 = vector.extract_strided_slice %201 {offsets = [0, 128], sizes = [8, 128], strides = [1, 1]} : vector<8x256xf32> to vector<8x128xf32>
    %204 = vector.broadcast %187 : vector<8x1xf32> to vector<8x128xf32>
    %205 = arith.mulf %204, %203 : vector<8x128xf32>
    %206 = vector.extract_strided_slice %185 {offsets = [0, 256], sizes = [8, 128], strides = [1, 1]} : vector<8x384xf32> to vector<8x128xf32>
    %207 = vector.extract_strided_slice %191 {offsets = [0, 256], sizes = [8, 128], strides = [1, 1]} : vector<8x384xf32> to vector<8x128xf32>
    %208 = arith.mulf %202, %207 : vector<8x128xf32>
    %209 = arith.addf %206, %208 : vector<8x128xf32>
    %210 = math.tanh %209 : vector<8x128xf32>
    %cst_89 = arith.constant 1.000000e+00 : f32
    %211 = vector.broadcast %cst_89 : f32 to vector<8x128xf32>
    %212 = arith.subf %211, %205 : vector<8x128xf32>
    %213 = arith.mulf %212, %210 : vector<8x128xf32>
    %214 = arith.mulf %205, %181 : vector<8x128xf32>
    %215 = arith.addf %213, %214 : vector<8x128xf32>
    %216 = arith.select %12, %181, %215 : vector<8x128xf32>
    %c5_90 = arith.constant 5 : index
    %c0_91 = arith.constant 0 : index
    %c0_92 = arith.constant 0 : index
    %217 = vector.load %arg9[%c5_90, %c0_91, %c0_92] : memref<8x8x128xf32, #tpu.memory_space<vmem>>, vector<1x8x128xf32>
    %218 = vector.shape_cast %217 : vector<1x8x128xf32> to vector<8x128xf32>
    %219 = vector.shape_cast %216 : vector<8x128xf32> to vector<1x8x128xf32>
    tpu.vector_store %arg9[%c5_90, %c0_91, %c0_92], %219 {strides = array<i32>} : memref<8x8x128xf32, #tpu.memory_space<vmem>>, vector<1x8x128xf32>,
    %c48 = arith.constant 48 : index
    %c0_93 = arith.constant 0 : index
    %220 = vector.load %arg12[%c48, %c0_93] : memref<64x384xf32, #tpu.memory_space<vmem>>, vector<8x384xf32>
    %c6 = arith.constant 6 : index
    %c0_94 = arith.constant 0 : index
    %c0_95 = arith.constant 0 : index
    %221 = vector.load %arg3[%c6, %c0_94, %c0_95] : memref<8x8x1xf32, #tpu.memory_space<vmem>>, vector<1x8x1xf32>
    %222 = vector.shape_cast %221 : vector<1x8x1xf32> to vector<8x1xf32>
    %c0_96 = arith.constant 0 : index
    %c0_97 = arith.constant 0 : index
    %223 = vector.load %arg7[%c0_96, %c0_97] : memref<128x384xf32, #tpu.memory_space<vmem>>, vector<128x384xf32>
    %cst_98 = arith.constant dense<0.000000e+00> : vector<8x384xf32>
    %224 = tpu.matmul %216, %223, %cst_98 {dimension_numbers = #tpu.dot_dimension_numbers<[1], [0], [0], [1], [0, 0, 1, 1], [], []>} : vector<8x128xf32>, vector<128x384xf32>, vector<8x384xf32> -> vector<8x384xf32>
    %225 = vector.broadcast %11 : vector<1x384xf32> to vector<8x384xf32>
    %226 = arith.addf %224, %225 : vector<8x384xf32>
    %227 = vector.extract_strided_slice %220 {offsets = [0, 0], sizes = [8, 256], strides = [1, 1]} : vector<8x384xf32> to vector<8x256xf32>
    %228 = vector.extract_strided_slice %226 {offsets = [0, 0], sizes = [8, 256], strides = [1, 1]} : vector<8x384xf32> to vector<8x256xf32>
    %229 = arith.addf %227, %228 : vector<8x256xf32>
    %cst_99 = arith.constant 5.000000e-01 : f32
    %230 = vector.broadcast %cst_99 : f32 to vector<8x256xf32>
    %231 = arith.mulf %230, %229 : vector<8x256xf32>
    %232 = math.tanh %231 : vector<8x256xf32>
    %cst_100 = arith.constant 5.000000e-01 : f32
    %233 = vector.broadcast %cst_100 : f32 to vector<8x256xf32>
    %234 = arith.mulf %233, %232 : vector<8x256xf32>
    %cst_101 = arith.constant 5.000000e-01 : f32
    %235 = vector.broadcast %cst_101 : f32 to vector<8x256xf32>
    %236 = arith.addf %234, %235 : vector<8x256xf32>
    %237 = vector.extract_strided_slice %236 {offsets = [0, 0], sizes = [8, 128], strides = [1, 1]} : vector<8x256xf32> to vector<8x128xf32>
    %238 = vector.extract_strided_slice %236 {offsets = [0, 128], sizes = [8, 128], strides = [1, 1]} : vector<8x256xf32> to vector<8x128xf32>
    %239 = vector.broadcast %222 : vector<8x1xf32> to vector<8x128xf32>
    %240 = arith.mulf %239, %238 : vector<8x128xf32>
    %241 = vector.extract_strided_slice %220 {offsets = [0, 256], sizes = [8, 128], strides = [1, 1]} : vector<8x384xf32> to vector<8x128xf32>
    %242 = vector.extract_strided_slice %226 {offsets = [0, 256], sizes = [8, 128], strides = [1, 1]} : vector<8x384xf32> to vector<8x128xf32>
    %243 = arith.mulf %237, %242 : vector<8x128xf32>
    %244 = arith.addf %241, %243 : vector<8x128xf32>
    %245 = math.tanh %244 : vector<8x128xf32>
    %cst_102 = arith.constant 1.000000e+00 : f32
    %246 = vector.broadcast %cst_102 : f32 to vector<8x128xf32>
    %247 = arith.subf %246, %240 : vector<8x128xf32>
    %248 = arith.mulf %247, %245 : vector<8x128xf32>
    %249 = arith.mulf %240, %216 : vector<8x128xf32>
    %250 = arith.addf %248, %249 : vector<8x128xf32>
    %251 = arith.select %12, %216, %250 : vector<8x128xf32>
    %c6_103 = arith.constant 6 : index
    %c0_104 = arith.constant 0 : index
    %c0_105 = arith.constant 0 : index
    %252 = vector.load %arg9[%c6_103, %c0_104, %c0_105] : memref<8x8x128xf32, #tpu.memory_space<vmem>>, vector<1x8x128xf32>
    %253 = vector.shape_cast %252 : vector<1x8x128xf32> to vector<8x128xf32>
    %254 = vector.shape_cast %251 : vector<8x128xf32> to vector<1x8x128xf32>
    tpu.vector_store %arg9[%c6_103, %c0_104, %c0_105], %254 {strides = array<i32>} : memref<8x8x128xf32, #tpu.memory_space<vmem>>, vector<1x8x128xf32>,
    %c56 = arith.constant 56 : index
    %c0_106 = arith.constant 0 : index
    %255 = vector.load %arg12[%c56, %c0_106] : memref<64x384xf32, #tpu.memory_space<vmem>>, vector<8x384xf32>
    %c7 = arith.constant 7 : index
    %c0_107 = arith.constant 0 : index
    %c0_108 = arith.constant 0 : index
    %256 = vector.load %arg3[%c7, %c0_107, %c0_108] : memref<8x8x1xf32, #tpu.memory_space<vmem>>, vector<1x8x1xf32>
    %257 = vector.shape_cast %256 : vector<1x8x1xf32> to vector<8x1xf32>
    %c0_109 = arith.constant 0 : index
    %c0_110 = arith.constant 0 : index
    %258 = vector.load %arg7[%c0_109, %c0_110] : memref<128x384xf32, #tpu.memory_space<vmem>>, vector<128x384xf32>
    %cst_111 = arith.constant dense<0.000000e+00> : vector<8x384xf32>
    %259 = tpu.matmul %251, %258, %cst_111 {dimension_numbers = #tpu.dot_dimension_numbers<[1], [0], [0], [1], [0, 0, 1, 1], [], []>} : vector<8x128xf32>, vector<128x384xf32>, vector<8x384xf32> -> vector<8x384xf32>
    %260 = vector.broadcast %11 : vector<1x384xf32> to vector<8x384xf32>
    %261 = arith.addf %259, %260 : vector<8x384xf32>
    %262 = vector.extract_strided_slice %255 {offsets = [0, 0], sizes = [8, 256], strides = [1, 1]} : vector<8x384xf32> to vector<8x256xf32>
    %263 = vector.extract_strided_slice %261 {offsets = [0, 0], sizes = [8, 256], strides = [1, 1]} : vector<8x384xf32> to vector<8x256xf32>
    %264 = arith.addf %262, %263 : vector<8x256xf32>
    %cst_112 = arith.constant 5.000000e-01 : f32
    %265 = vector.broadcast %cst_112 : f32 to vector<8x256xf32>
    %266 = arith.mulf %265, %264 : vector<8x256xf32>
    %267 = math.tanh %266 : vector<8x256xf32>
    %cst_113 = arith.constant 5.000000e-01 : f32
    %268 = vector.broadcast %cst_113 : f32 to vector<8x256xf32>
    %269 = arith.mulf %268, %267 : vector<8x256xf32>
    %cst_114 = arith.constant 5.000000e-01 : f32
    %270 = vector.broadcast %cst_114 : f32 to vector<8x256xf32>
    %271 = arith.addf %269, %270 : vector<8x256xf32>
    %272 = vector.extract_strided_slice %271 {offsets = [0, 0], sizes = [8, 128], strides = [1, 1]} : vector<8x256xf32> to vector<8x128xf32>
    %273 = vector.extract_strided_slice %271 {offsets = [0, 128], sizes = [8, 128], strides = [1, 1]} : vector<8x256xf32> to vector<8x128xf32>
    %274 = vector.broadcast %257 : vector<8x1xf32> to vector<8x128xf32>
    %275 = arith.mulf %274, %273 : vector<8x128xf32>
    %276 = vector.extract_strided_slice %255 {offsets = [0, 256], sizes = [8, 128], strides = [1, 1]} : vector<8x384xf32> to vector<8x128xf32>
    %277 = vector.extract_strided_slice %261 {offsets = [0, 256], sizes = [8, 128], strides = [1, 1]} : vector<8x384xf32> to vector<8x128xf32>
    %278 = arith.mulf %272, %277 : vector<8x128xf32>
    %279 = arith.addf %276, %278 : vector<8x128xf32>
    %280 = math.tanh %279 : vector<8x128xf32>
    %cst_115 = arith.constant 1.000000e+00 : f32
    %281 = vector.broadcast %cst_115 : f32 to vector<8x128xf32>
    %282 = arith.subf %281, %275 : vector<8x128xf32>
    %283 = arith.mulf %282, %280 : vector<8x128xf32>
    %284 = arith.mulf %275, %251 : vector<8x128xf32>
    %285 = arith.addf %283, %284 : vector<8x128xf32>
    %286 = arith.select %12, %251, %285 : vector<8x128xf32>
    %c7_116 = arith.constant 7 : index
    %c0_117 = arith.constant 0 : index
    %c0_118 = arith.constant 0 : index
    %287 = vector.load %arg9[%c7_116, %c0_117, %c0_118] : memref<8x8x128xf32, #tpu.memory_space<vmem>>, vector<1x8x128xf32>
    %288 = vector.shape_cast %287 : vector<1x8x128xf32> to vector<8x128xf32>
    %289 = vector.shape_cast %286 : vector<8x128xf32> to vector<1x8x128xf32>
    tpu.vector_store %arg9[%c7_116, %c0_117, %c0_118], %289 {strides = array<i32>} : memref<8x8x128xf32, #tpu.memory_space<vmem>>, vector<1x8x128xf32>,
    %c0_119 = arith.constant 0 : index
    %c0_120 = arith.constant 0 : index
    %290 = vector.load %arg11[%c0_119, %c0_120] : memref<8x128xf32, #tpu.memory_space<vmem>>, vector<8x128xf32>
    tpu.vector_store %arg11[%c0_119, %c0_120], %286 {strides = array<i32>} : memref<8x128xf32, #tpu.memory_space<vmem>>, vector<8x128xf32>,
    %291 = arith.extui %12 : i1 to i32
    %c0_i32_121 = arith.constant 0 : i32
    %292 = arith.cmpi ne, %291, %c0_i32_121 : i32
    scf.if %292 {
      %c0_122 = arith.constant 0 : index
      %c0_123 = arith.constant 0 : index
      %293 = vector.load %arg10[%c0_122, %c0_123] : memref<8x128xf32, #tpu.memory_space<vmem>>, vector<8x128xf32>
      tpu.vector_store %arg10[%c0_122, %c0_123], %286 {strides = array<i32>} : memref<8x128xf32, #tpu.memory_space<vmem>>, vector<8x128xf32>,
    } else {
    }
    return
  }
  func.func @transform_0(%arg0: i32, %arg1: i32) -> (i32, i32, i32) {
    %c0_i32 = arith.constant 0 : i32
    %c0_i32_0 = arith.constant 0 : i32
    return %arg1, %arg0, %c0_i32 : i32, i32, i32
  }
  func.func @transform_1(%arg0: i32, %arg1: i32) -> (i32, i32, i32) {
    %c0_i32 = arith.constant 0 : i32
    %c0_i32_0 = arith.constant 0 : i32
    return %arg1, %arg0, %c0_i32 : i32, i32, i32
  }
  func.func @transform_2(%arg0: i32, %arg1: i32) -> (i32, i32) {
    %c0_i32 = arith.constant 0 : i32
    %c0_i32_0 = arith.constant 0 : i32
    return %arg0, %c0_i32 : i32, i32
  }
  func.func @transform_3(%arg0: i32, %arg1: i32) -> (i32, i32) {
    %c0_i32 = arith.constant 0 : i32
    %c0_i32_0 = arith.constant 0 : i32
    %c0_i32_1 = arith.constant 0 : i32
    return %c0_i32, %c0_i32_0 : i32, i32
  }
  func.func @transform_4(%arg0: i32, %arg1: i32) -> (i32, i32) {
    %c0_i32 = arith.constant 0 : i32
    %c0_i32_0 = arith.constant 0 : i32
    %c0_i32_1 = arith.constant 0 : i32
    return %c0_i32, %c0_i32_0 : i32, i32
  }
  func.func @transform_5(%arg0: i32, %arg1: i32) -> (i32, i32) {
    %c0_i32 = arith.constant 0 : i32
    %c0_i32_0 = arith.constant 0 : i32
    %c0_i32_1 = arith.constant 0 : i32
    return %c0_i32, %c0_i32_0 : i32, i32
  }
  func.func @transform_6(%arg0: i32, %arg1: i32) -> (i32, i32) {
    %c0_i32 = arith.constant 0 : i32
    %c0_i32_0 = arith.constant 0 : i32
    %c0_i32_1 = arith.constant 0 : i32
    return %c0_i32, %c0_i32_0 : i32, i32
  }
  func.func @transform_7(%arg0: i32, %arg1: i32) -> (i32, i32, i32) {
    %c0_i32 = arith.constant 0 : i32
    %c0_i32_0 = arith.constant 0 : i32
    return %arg1, %arg0, %c0_i32 : i32, i32, i32
  }
  func.func @transform_8(%arg0: i32, %arg1: i32) -> (i32, i32) {
    %c0_i32 = arith.constant 0 : i32
    %c0_i32_0 = arith.constant 0 : i32
    return %arg0, %c0_i32 : i32, i32
  }
}

</mosaic_0001>

<llo_original>
// kernel: tpu_custom_call.1
$region0: #{tpu_custom_call.1}
  #allocation0 [shape = 'u32[]', space=smem, size = 0x4, offset = 0x4, fixed_abs, tag = 'smem constant byte address 0x4 - core index']
  #allocation1 [shape = 'u32[72,128]{1,0:T(1,128)}', space=vmem, size = 0x9000, scoped, tag = 'internal scratch']
  #allocation2 [shape = 'f32[8,128]{1,0:T(8,128)}', space=vmem, size = 0x1000, scoped, tag = 'scratch operand']
  #allocation3 [shape = 'f32[64,384]{1,0:T(8,128)}', space=vmem, size = 0x18000, scoped, tag = 'scratch operand']
  %s0 = inlined_call_operand.vmem [shape: f32[24,16,32], index: 0, kind: input, shape index: {}]
  %s1 = inlined_call_operand.vmem [shape: f32[24,16,1], index: 1, kind: input, shape index: {}]
  %s2 = inlined_call_operand.vmem [shape: f32[16,128], index: 2, kind: input, shape index: {}]
  %s3 = inlined_call_operand.hbm [shape: f32[32,384], index: 3, kind: input, shape index: {}]
  %s4 = inlined_call_operand.hbm [shape: f32[1,384], index: 4, kind: input, shape index: {}]
  %s5 = inlined_call_operand.hbm [shape: f32[128,384], index: 5, kind: input, shape index: {}]
  %s6 = inlined_call_operand.vmem [shape: f32[1,384], index: 6, kind: input, shape index: {}]
  %s7 = inlined_call_operand.hbm [shape: f32[24,16,128], index: 7, kind: output, shape index: {0}]
  %s8 = inlined_call_operand.hbm [shape: f32[16,128], index: 8, kind: output, shape index: {1}]
  %9 = xla_tuple %s7, %s8
  %s10 = sld [smem:[#allocation0]]
  $region165: #{tpu_custom_call.1} parent=0
    _
  %s12 = ssub.s32 1, %s10
  %s13 = scalar_select 0, %s12, %s10
  $region1: #{tpu_custom_call.1} parent=0
    #allocation4 [shape = 'u8[65536]{0}', space=vmem, size = 0x10000, scoped, tag = 'input window, operand 0']
    #allocation5 [shape = 'u8[65536]{0}', space=vmem, size = 0x10000, scoped, tag = 'input window, operand 1']
    #allocation6 [shape = 'u8[49152]{0}', space=vmem, size = 0xc000, scoped, tag = 'input window, operand 3, single buffered']
    #allocation7 [shape = 's32[2]{0}', space=sflag, size = 0x8, scoped, tag = 'scoped memory for tpu_custom_call.1']
    #allocation8 [shape = 's32[2]{0}', space=sflag, size = 0x8, scoped, tag = 'scoped memory for tpu_custom_call.1']
    #allocation9 [shape = 'u8[1536]{0}', space=vmem, size = 0x800, scoped, tag = 'input window, operand 4, single buffered']
    #allocation10 [shape = 's32[1]{0}', space=sflag, size = 0x4, scoped, tag = 'scoped memory for tpu_custom_call.1']
    #allocation11 [shape = 'u8[196608]{0}', space=vmem, size = 0x30000, scoped, tag = 'input window, operand 5, single buffered']
    #allocation12 [shape = 'u8[65536]{0}', space=vmem, size = 0x10000, scoped, tag = 'output window, operand 0']
    #allocation13 [shape = 'u8[8192]{0}', space=vmem, size = 0x2000, scoped, tag = 'output window, operand 1']
    #allocation14 [shape = 's32[2]{0}', space=sflag, size = 0x8, scoped, tag = 'scoped memory for tpu_custom_call.1']
    %14 = vsyncpa [#allocation7], 0
    %15 = vsyncpa [#allocation10], 0
    %16 = vsyncpa [#allocation8], 0
    %s17 = scalar_lea.sflag [#allocation8], 1
    %18 = vsyncpa %s17, 0
    %19 = vsyncpa [#allocation14], 0
    %s20 = scalar_lea.sflag [#allocation14], 1
    %21 = vsyncpa %s20, 0
    loop: start=0, step=1, limit=8
    $region2: #{tpu_custom_call.1} parent=1 // loop_pre_header
      _
    $region3: #{tpu_custom_call.1} parent=1 // loop_header
      %s23 = sphi 0, %s27
      %p24 = scmp.ge.s32.totalorder %s23, 8
      %s30 = sphi 0, %s42
      %s31 = sphi 0, %s38
      %s32 = sphi 0, %s30
      %s33 = sphi 0, %s31
      %s34 = sphi 0, %s32
      %s35 = sphi 0, %s33
      %s47 = sphi 0, %s49
      %s50 = sphi 0, %s47
      %s51 = sphi 0, %s50
      %s67 = sphi 0, %s51
      %s75 = sphi 0, %s77
      %s78 = sphi 0, %s75
      %s79 = sphi 0, %s78
      %s95 = sphi 0, %s79
      %s101 = sphi 0, %s103
      %s104 = sphi 0, %s101
      %s105 = sphi 0, %s104
      %s121 = sphi 0, %s105
      %s125 = sphi 0, %s125
      %s127 = sphi 0, %s125
      %s128 = sphi 0, %s127
      %s142 = sphi 0, %s128
      %s146 = sphi 0, %s146
      %s148 = sphi 0, %s146
      %s149 = sphi 0, %s148
      %s163 = sphi 0, %s149
      %s167 = sphi 0, %s167
      %s169 = sphi 0, %s167
      %s170 = sphi 0, %s169
      %s184 = sphi 0, %s170
      %s188 = sphi 0, %s188
      %s190 = sphi 0, %s188
      %s191 = sphi 0, %s190
      %s205 = sphi 0, %s191
      %s213 = sphi 0, %s215
      %s216 = sphi 0, %s213
      %s217 = sphi 0, %s216
      %s233 = sphi 0, %s217
      %s239 = sphi 0, %s241
      %s242 = sphi 0, %s239
      %s243 = sphi 0, %s242
      %s259 = sphi 0, %s243
    $region4: #{tpu_custom_call.1} parent=1 // loop_header_branch
      %26 = sbr.rel (%p24) target = $region8
    $region5: #{tpu_custom_call.1} parent=1 // loop_body
      %s28 = ssub.s32 %s23, 1
      %s29 = ssub.s32 %s23, 2
      %s36 = sadd.s32 1, %s31
      %p37 = scmp.ge.s32.totalorder %s36, 3
      %s38 = scalar_select %p37, 0, %s36
      %s39 = sadd.s32 1, %s30
      %s40 = scalar_select %p37, %s39, %s30
      %p41 = scmp.ge.s32.totalorder %s40, 2
      %s42 = scalar_select %p41, 0, %s40
      %s43 = ssub.s32 %s31, %s38
      %s44 = ssub.s32 %s30, %s42
      %s45 = sor.u32 %s43, %s44
      %p46 = scmp.eq.s32.totalorder %s45, 0
      %s48 = sadd.s32 %s47, 1
      %s49 = scalar_select %p46, %s47, %s48
      %p52 = pneg %p46
      %p53 = scmp.eq.s32.totalorder %s23, 5
      %p54 = por %p52, %p53
      %p55 = scmp.ne.s32.totalorder %s47, %s50
      %p56 = scmp.eq.s32.totalorder %s23, 0
      %p57 = por %p55, %p56
      %p58 = scmp.ne.s32.totalorder %s47, %s50
      %p59 = scmp.eq.s32.totalorder %s28, 5
      %p60 = por %p58, %p59
      %p61 = scmp.ne.s32.totalorder %s50, %s51
      %p62 = scmp.eq.s32.totalorder %s28, 0
      %p63 = por %p61, %p62
      %p64 = scmp.ne.s32.totalorder %s50, %s51
      %p65 = scmp.eq.s32.totalorder %s29, 5
      %p66 = por %p64, %p65
      %p68 = scmp.ne.s32.totalorder %s51, %s67
      %p69 = scmp.eq.s32.totalorder %s29, 0
      %p70 = por %p68, %p69
      %s71 = ssub.s32 %s31, %s38
      %s72 = ssub.s32 %s30, %s42
      %s73 = sor.u32 %s71, %s72
      %p74 = scmp.eq.s32.totalorder %s73, 0
      %s76 = sadd.s32 %s75, 1
      %s77 = scalar_select %p74, %s75, %s76
      %p80 = pneg %p74
      %p81 = scmp.eq.s32.totalorder %s23, 5
      %p82 = por %p80, %p81
      %p83 = scmp.ne.s32.totalorder %s75, %s78
      %p84 = scmp.eq.s32.totalorder %s23, 0
      %p85 = por %p83, %p84
      %p86 = scmp.ne.s32.totalorder %s75, %s78
      %p87 = scmp.eq.s32.totalorder %s28, 5
      %p88 = por %p86, %p87
      %p89 = scmp.ne.s32.totalorder %s78, %s79
      %p90 = scmp.eq.s32.totalorder %s28, 0
      %p91 = por %p89, %p90
      %p92 = scmp.ne.s32.totalorder %s78, %s79
      %p93 = scmp.eq.s32.totalorder %s29, 5
      %p94 = por %p92, %p93
      %p96 = scmp.ne.s32.totalorder %s79, %s95
      %p97 = scmp.eq.s32.totalorder %s29, 0
      %p98 = por %p96, %p97
      %s99 = ssub.s32 %s30, %s42
      %p100 = scmp.eq.s32.totalorder %s99, 0
      %s102 = sadd.s32 %s101, 1
      %s103 = scalar_select %p100, %s101, %s102
      %p106 = pneg %p100
      %p107 = scmp.eq.s32.totalorder %s23, 5
      %p108 = por %p106, %p107
      %p109 = scmp.ne.s32.totalorder %s101, %s104
      %p110 = scmp.eq.s32.totalorder %s23, 0
      %p111 = por %p109, %p110
      %p112 = scmp.ne.s32.totalorder %s101, %s104
      %p113 = scmp.eq.s32.totalorder %s28, 5
      %p114 = por %p112, %p113
      %p115 = scmp.ne.s32.totalorder %s104, %s105
      %p116 = scmp.eq.s32.totalorder %s28, 0
      %p117 = por %p115, %p116
      %p118 = scmp.ne.s32.totalorder %s104, %s105
      %p119 = scmp.eq.s32.totalorder %s29, 5
      %p120 = por %p118, %p119
      %p122 = scmp.ne.s32.totalorder %s105, %s121
      %p123 = scmp.eq.s32.totalorder %s29, 0
      %p124 = por %p122, %p123
      %s126 = sadd.s32 %s125, 1
      %p129 = scmp.eq.s32.totalorder %s23, 5
      %p130 = scmp.ne.s32.totalorder %s125, %s127
      %p131 = scmp.eq.s32.totalorder %s23, 0
      %p132 = por %p130, %p131
      %p133 = scmp.ne.s32.totalorder %s125, %s127
      %p134 = scmp.eq.s32.totalorder %s28, 5
      %p135 = por %p133, %p134
      %p136 = scmp.ne.s32.totalorder %s127, %s128
      %p137 = scmp.eq.s32.totalorder %s28, 0
      %p138 = por %p136, %p137
      %p139 = scmp.ne.s32.totalorder %s127, %s128
      %p140 = scmp.eq.s32.totalorder %s29, 5
      %p141 = por %p139, %p140
      %p143 = scmp.ne.s32.totalorder %s128, %s142
      %p144 = scmp.eq.s32.totalorder %s29, 0
      %p145 = por %p143, %p144
      %s147 = sadd.s32 %s146, 1
      %p150 = scmp.eq.s32.totalorder %s23, 5
      %p151 = scmp.ne.s32.totalorder %s146, %s148
      %p152 = scmp.eq.s32.totalorder %s23, 0
      %p153 = por %p151, %p152
      %p154 = scmp.ne.s32.totalorder %s146, %s148
      %p155 = scmp.eq.s32.totalorder %s28, 5
      %p156 = por %p154, %p155
      %p157 = scmp.ne.s32.totalorder %s148, %s149
      %p158 = scmp.eq.s32.totalorder %s28, 0
      %p159 = por %p157, %p158
      %p160 = scmp.ne.s32.totalorder %s148, %s149
      %p161 = scmp.eq.s32.totalorder %s29, 5
      %p162 = por %p160, %p161
      %p164 = scmp.ne.s32.totalorder %s149, %s163
      %p165 = scmp.eq.s32.totalorder %s29, 0
      %p166 = por %p164, %p165
      %s168 = sadd.s32 %s167, 1
      %p171 = scmp.eq.s32.totalorder %s23, 5
      %p172 = scmp.ne.s32.totalorder %s167, %s169
      %p173 = scmp.eq.s32.totalorder %s23, 0
      %p174 = por %p172, %p173
      %p175 = scmp.ne.s32.totalorder %s167, %s169
      %p176 = scmp.eq.s32.totalorder %s28, 5
      %p177 = por %p175, %p176
      %p178 = scmp.ne.s32.totalorder %s169, %s170
      %p179 = scmp.eq.s32.totalorder %s28, 0
      %p180 = por %p178, %p179
      %p181 = scmp.ne.s32.totalorder %s169, %s170
      %p182 = scmp.eq.s32.totalorder %s29, 5
      %p183 = por %p181, %p182
      %p185 = scmp.ne.s32.totalorder %s170, %s184
      %p186 = scmp.eq.s32.totalorder %s29, 0
      %p187 = por %p185, %p186
      %s189 = sadd.s32 %s188, 1
      %p192 = scmp.eq.s32.totalorder %s23, 5
      %p193 = scmp.ne.s32.totalorder %s188, %s190
      %p194 = scmp.eq.s32.totalorder %s23, 0
      %p195 = por %p193, %p194
      %p196 = scmp.ne.s32.totalorder %s188, %s190
      %p197 = scmp.eq.s32.totalorder %s28, 5
      %p198 = por %p196, %p197
      %p199 = scmp.ne.s32.totalorder %s190, %s191
      %p200 = scmp.eq.s32.totalorder %s28, 0
      %p201 = por %p199, %p200
      %p202 = scmp.ne.s32.totalorder %s190, %s191
      %p203 = scmp.eq.s32.totalorder %s29, 5
      %p204 = por %p202, %p203
      %p206 = scmp.ne.s32.totalorder %s191, %s205
      %p207 = scmp.eq.s32.totalorder %s29, 0
      %p208 = por %p206, %p207
      %s209 = ssub.s32 %s31, %s38
      %s210 = ssub.s32 %s30, %s42
      %s211 = sor.u32 %s209, %s210
      %p212 = scmp.eq.s32.totalorder %s211, 0
      %s214 = sadd.s32 %s213, 1
      %s215 = scalar_select %p212, %s213, %s214
      %p218 = pneg %p212
      %p219 = scmp.eq.s32.totalorder %s23, 5
      %p220 = por %p218, %p219
      %p221 = scmp.ne.s32.totalorder %s213, %s216
      %p222 = scmp.eq.s32.totalorder %s23, 0
      %p223 = por %p221, %p222
      %p224 = scmp.ne.s32.totalorder %s213, %s216
      %p225 = scmp.eq.s32.totalorder %s28, 5
      %p226 = por %p224, %p225
      %p227 = scmp.ne.s32.totalorder %s216, %s217
      %p228 = scmp.eq.s32.totalorder %s28, 0
      %p229 = por %p227, %p228
      %p230 = scmp.ne.s32.totalorder %s216, %s217
      %p231 = scmp.eq.s32.totalorder %s29, 5
      %p232 = por %p230, %p231
      %p234 = scmp.ne.s32.totalorder %s217, %s233
      %p235 = scmp.eq.s32.totalorder %s29, 0
      %p236 = por %p234, %p235
      %s237 = ssub.s32 %s30, %s42
      %p238 = scmp.eq.s32.totalorder %s237, 0
      %s240 = sadd.s32 %s239, 1
      %s241 = scalar_select %p238, %s239, %s240
      %p244 = pneg %p238
      %p245 = scmp.eq.s32.totalorder %s23, 5
      %p246 = por %p244, %p245
      %p247 = scmp.ne.s32.totalorder %s239, %s242
      %p248 = scmp.eq.s32.totalorder %s23, 0
      %p249 = por %p247, %p248
      %p250 = scmp.ne.s32.totalorder %s239, %s242
      %p251 = scmp.eq.s32.totalorder %s28, 5
      %p252 = por %p250, %p251
      %p253 = scmp.ne.s32.totalorder %s242, %s243
      %p254 = scmp.eq.s32.totalorder %s28, 0
      %p255 = por %p253, %p254
      %p256 = scmp.ne.s32.totalorder %s242, %s243
      %p257 = scmp.eq.s32.totalorder %s29, 5
      %p258 = por %p256, %p257
      %p260 = scmp.ne.s32.totalorder %s243, %s259
      %p261 = scmp.eq.s32.totalorder %s29, 0
      %p262 = por %p260, %p261
      %p263 = scmp.le.s32.totalorder 1, %s23
      %p264 = scmp.lt.s32.totalorder %s23, 7
      %p265 = pnand %p263, %p264
      %p266 = pneg %p265
      // Predicated region
      $region9: #{tpu_custom_call.1} parent=5 // pred_check
        _
      $region10: #{tpu_custom_call.1} parent=5 // pred_check_branch
        %268 = sbr.rel (%p265) target = $region12
      $region11: #{tpu_custom_call.1} parent=5 // pred_region
        %s269 = ssub.s32 %s23, 1
        // Predicated region
        $region13: #{tpu_custom_call.1} parent=11 // pred_check
          %p270 = pneg %p138
        $region14: #{tpu_custom_call.1} parent=11 // pred_check_branch
          %272 = sbr.rel (%p270) target = $region16
        $region15: #{tpu_custom_call.1} parent=11 // pred_region
          %274 = vsyncadd [#allocation7], 0
          %s275 = sshll.u32 %s3, 4
          %s276 = int_to_ptr.hbm [resolvable:$true] %s275
          %s277 = sshll.u32 [#allocation6], 4
          %s278 = int_to_ptr.vmem [resolvable:$true] %s277
          %283 = dma.hbm_to_vmem [thread:$0]  %s276, 1536, %s278, [#allocation7], 384, 384, 24
        $region16: #{tpu_custom_call.1} parent=11 // pred_fallthru
          _
        // Predicated region
        $region17: #{tpu_custom_call.1} parent=11 // pred_check
          %p284 = pneg %p159
        $region18: #{tpu_custom_call.1} parent=11 // pred_check_branch
          %286 = sbr.rel (%p284) target = $region20
        $region19: #{tpu_custom_call.1} parent=11 // pred_region
          %288 = vsyncadd [#allocation10], 0
          %s290 = sshll.u32 %s4, 4
          %s291 = int_to_ptr.hbm [resolvable:$true] %s290
          %s292 = sshll.u32 [#allocation9], 4
          %s293 = int_to_ptr.vmem [resolvable:$true] %s292
          %295 = dma.hbm_to_vmem [thread:$0]  %s291, 48, %s293, [#allocation10]
        $region20: #{tpu_custom_call.1} parent=11 // pred_fallthru
          _
        // Predicated region
        $region21: #{tpu_custom_call.1} parent=11 // pred_check
          %p296 = pneg %p180
        $region22: #{tpu_custom_call.1} parent=11 // pred_check_branch
          %298 = sbr.rel (%p296) target = $region24
        $region23: #{tpu_custom_call.1} parent=11 // pred_region
          %300 = vsyncadd [#allocation10], 0
          %s301 = sshll.u32 %s5, 4
          %s302 = int_to_ptr.hbm [resolvable:$true] %s301
          %s303 = sshll.u32 [#allocation11], 4
          %s304 = int_to_ptr.vmem [resolvable:$true] %s303
          %309 = dma.hbm_to_vmem [thread:$0]  %s302, 6144, %s304, [#allocation10], 384, 384, 24
        $region24: #{tpu_custom_call.1} parent=11 // pred_fallthru
          _
        // Predicated region
        $region25: #{tpu_custom_call.1} parent=11 // pred_check
          %p310 = pneg %p201
        $region26: #{tpu_custom_call.1} parent=11 // pred_check_branch
          %312 = sbr.rel (%p310) target = $region28
        $region27: #{tpu_custom_call.1} parent=11 // pred_region
          _
        $region28: #{tpu_custom_call.1} parent=11 // pred_fallthru
          _
      $region12: #{tpu_custom_call.1} parent=5 // pred_fallthru
        _
      %p313 = scmp.lt.s32.totalorder %s23, 6
      // Predicated region
      $region29: #{tpu_custom_call.1} parent=5 // pred_check
        %p314 = pneg %p313
      $region30: #{tpu_custom_call.1} parent=5 // pred_check_branch
        %316 = sbr.rel (%p314) target = $region32
      $region31: #{tpu_custom_call.1} parent=5 // pred_region
        // Predicated region
        $region33: #{tpu_custom_call.1} parent=31 // pred_check
          %p317 = pneg %p57
        $region34: #{tpu_custom_call.1} parent=31 // pred_check_branch
          %319 = sbr.rel (%p317) target = $region36
        $region35: #{tpu_custom_call.1} parent=31 // pred_region
          %s320 = sand.u32 %s47, 1
          %s321 = sand.u32 %s47, 1
          %s322 = smul.addr %s321, 64
          %s323 = scalar_lea.vmem [#allocation4], %s322
          %s324 = smul.u32 8, %s31
          %s325 = smul.addr %s324, 2
          %s326 = sadd.s32 %s30, %s325
          %s327 = smul.addr %s326, 8
          %s328 = scalar_lea.vmem %s0, %s327
          // Predicated region
          $region37: #{tpu_custom_call.1} parent=35 // pred_check
            _
          $region38: #{tpu_custom_call.1} parent=35 // pred_check_branch
            %330 = sbr.rel (0) target = $region40
          $region39: #{tpu_custom_call.1} parent=35 // pred_region
            // Predicated region
            $region41: #{tpu_custom_call.1} parent=39 // pred_check
              _
            $region42: #{tpu_custom_call.1} parent=39 // pred_check_branch
              %332 = sbr.rel (0) target = $region44
            $region43: #{tpu_custom_call.1} parent=39 // pred_region
              // Predicated region
              $region56: #{tpu_custom_call.1} parent=43 // pred_check
                _
              $region57: #{tpu_custom_call.1} parent=43 // pred_check_branch
                %362 = sbr.rel (0) target = $region59
              $region58: #{tpu_custom_call.1} parent=43 // pred_region
                loop: start=0, step=1, limit=1
                $region60: #{tpu_custom_call.1} parent=58 // loop_pre_header
                  _
                $region61: #{tpu_custom_call.1} parent=58 // loop_header
                  %s364 = sphi 0, %s368
                  %p365 = scmp.ge.s32.totalorder %s364, 1
                  %s369 = sphi %s328, %s328
                  %s370 = sphi %s323, %s323
                $region62: #{tpu_custom_call.1} parent=58 // loop_header_branch
                  %367 = sbr.rel (%p365) target = $region66
                $region63: #{tpu_custom_call.1} parent=58 // loop_body
                  %v371 = vld [vmem:[%s369] sm:$0xff]
                  %372 = vst [vmem:[%s370] sm:$0xff] %v371
                  %v373 = vld [vmem:[%s369 + $0x10] sm:$0xff]
                  %374 = vst [vmem:[%s370 + $0x8] sm:$0xff] %v373
                  %v375 = vld [vmem:[%s369 + $0x20] sm:$0xff]
                  %376 = vst [vmem:[%s370 + $0x10] sm:$0xff] %v375
                  %v377 = vld [vmem:[%s369 + $0x30] sm:$0xff]
                  %378 = vst [vmem:[%s370 + $0x18] sm:$0xff] %v377
                  %v379 = vld [vmem:[%s369 + $0x40] sm:$0xff]
                  %380 = vst [vmem:[%s370 + $0x20] sm:$0xff] %v379
                  %v381 = vld [vmem:[%s369 + $0x50] sm:$0xff]
                  %382 = vst [vmem:[%s370 + $0x28] sm:$0xff] %v381
                  %v383 = vld [vmem:[%s369 + $0x60] sm:$0xff]
                  %384 = vst [vmem:[%s370 + $0x30] sm:$0xff] %v383
                  %v385 = vld [vmem:[%s369 + $0x70] sm:$0xff]
                  %386 = vst [vmem:[%s370 + $0x38] sm:$0xff] %v385
                $region64: #{tpu_custom_call.1} parent=58 // loop_footer
                  %s368 = sadd.s32 1, %s364
                $region65: #{tpu_custom_call.1} parent=58 // loop_footer_branch
                  %363 = sbr.rel target = $region61
                $region66: #{tpu_custom_call.1} parent=58 // loop_exit
                  _
              $region59: #{tpu_custom_call.1} parent=43 // pred_fallthru
                _
              // Predicated region
              $region67: #{tpu_custom_call.1} parent=43 // pred_check
                _
              $region68: #{tpu_custom_call.1} parent=43 // pred_check_branch
                %388 = sbr.rel target = $region70
              $region69: #{tpu_custom_call.1} parent=43 // pred_region
                _
              $region70: #{tpu_custom_call.1} parent=43 // pred_fallthru
                _
            $region44: #{tpu_custom_call.1} parent=39 // pred_fallthru
              _
            // Predicated region
            $region45: #{tpu_custom_call.1} parent=39 // pred_check
              _
            $region46: #{tpu_custom_call.1} parent=39 // pred_check_branch
              %334 = sbr.rel target = $region48
            $region47: #{tpu_custom_call.1} parent=39 // pred_region
              %s336 = ssub.s32 256, 1
              loop: start=0, step=1, limit=1
              $region49: #{tpu_custom_call.1} parent=47 // loop_pre_header
                _
              $region50: #{tpu_custom_call.1} parent=47 // loop_header
                %s338 = sphi 0, %s342
                %p339 = scmp.ge.s32.totalorder %s338, 1
                %s343 = sphi %s328, %s328
                %s344 = sphi %s323, %s323
              $region51: #{tpu_custom_call.1} parent=47 // loop_header_branch
                %341 = sbr.rel (%p339) target = $region55
              $region52: #{tpu_custom_call.1} parent=47 // loop_body
                %v345 = vld [vmem:[%s343] sm:%s336]
                %346 = vst [vmem:[%s344] sm:%s336] %v345
                %v347 = vld [vmem:[%s343 + $0x10] sm:%s336]
                %348 = vst [vmem:[%s344 + $0x8] sm:%s336] %v347
                %v349 = vld [vmem:[%s343 + $0x20] sm:%s336]
                %350 = vst [vmem:[%s344 + $0x10] sm:%s336] %v349
                %v351 = vld [vmem:[%s343 + $0x30] sm:%s336]
                %352 = vst [vmem:[%s344 + $0x18] sm:%s336] %v351
                %v353 = vld [vmem:[%s343 + $0x40] sm:%s336]
                %354 = vst [vmem:[%s344 + $0x20] sm:%s336] %v353
                %v355 = vld [vmem:[%s343 + $0x50] sm:%s336]
                %356 = vst [vmem:[%s344 + $0x28] sm:%s336] %v355
                %v357 = vld [vmem:[%s343 + $0x60] sm:%s336]
                %358 = vst [vmem:[%s344 + $0x30] sm:%s336] %v357
                %v359 = vld [vmem:[%s343 + $0x70] sm:%s336]
                %360 = vst [vmem:[%s344 + $0x38] sm:%s336] %v359
              $region53: #{tpu_custom_call.1} parent=47 // loop_footer
                %s342 = sadd.s32 1, %s338
              $region54: #{tpu_custom_call.1} parent=47 // loop_footer_branch
                %337 = sbr.rel target = $region50
              $region55: #{tpu_custom_call.1} parent=47 // loop_exit
                _
            $region48: #{tpu_custom_call.1} parent=39 // pred_fallthru
              _
          $region40: #{tpu_custom_call.1} parent=35 // pred_fallthru
            _
          %389 = vnop
        $region36: #{tpu_custom_call.1} parent=31 // pred_fallthru
          _
        // Predicated region
        $region71: #{tpu_custom_call.1} parent=31 // pred_check
          %p390 = pneg %p85
        $region72: #{tpu_custom_call.1} parent=31 // pred_check_branch
          %392 = sbr.rel (%p390) target = $region74
        $region73: #{tpu_custom_call.1} parent=31 // pred_region
          %s393 = sand.u32 %s75, 1
          %s394 = sand.u32 %s75, 1
          %s395 = smul.addr %s394, 64
          %s396 = scalar_lea.vmem [#allocation5], %s395
          %s397 = smul.u32 8, %s31
          %s398 = smul.addr %s397, 2
          %s399 = sadd.s32 %s30, %s398
          %s400 = smul.addr %s399, 8
          %s401 = scalar_lea.vmem %s1, %s400
          // Predicated region
          $region75: #{tpu_custom_call.1} parent=73 // pred_check
            _
          $region76: #{tpu_custom_call.1} parent=73 // pred_check_branch
            %403 = sbr.rel (0) target = $region78
          $region77: #{tpu_custom_call.1} parent=73 // pred_region
            // Predicated region
            $region79: #{tpu_custom_call.1} parent=77 // pred_check
              _
            $region80: #{tpu_custom_call.1} parent=77 // pred_check_branch
              %405 = sbr.rel (0) target = $region82
            $region81: #{tpu_custom_call.1} parent=77 // pred_region
              // Predicated region
              $region94: #{tpu_custom_call.1} parent=81 // pred_check
                _
              $region95: #{tpu_custom_call.1} parent=81 // pred_check_branch
                %435 = sbr.rel (0) target = $region97
              $region96: #{tpu_custom_call.1} parent=81 // pred_region
                loop: start=0, step=1, limit=1
                $region98: #{tpu_custom_call.1} parent=96 // loop_pre_header
                  _
                $region99: #{tpu_custom_call.1} parent=96 // loop_header
                  %s437 = sphi 0, %s441
                  %p438 = scmp.ge.s32.totalorder %s437, 1
                  %s442 = sphi %s401, %s401
                  %s443 = sphi %s396, %s396
                $region100: #{tpu_custom_call.1} parent=96 // loop_header_branch
                  %440 = sbr.rel (%p438) target = $region104
                $region101: #{tpu_custom_call.1} parent=96 // loop_body
                  %v444 = vld [vmem:[%s442] sm:$0xff]
                  %445 = vst [vmem:[%s443] sm:$0xff] %v444
                  %v446 = vld [vmem:[%s442 + $0x10] sm:$0xff]
                  %447 = vst [vmem:[%s443 + $0x8] sm:$0xff] %v446
                  %v448 = vld [vmem:[%s442 + $0x20] sm:$0xff]
                  %449 = vst [vmem:[%s443 + $0x10] sm:$0xff] %v448
                  %v450 = vld [vmem:[%s442 + $0x30] sm:$0xff]
                  %451 = vst [vmem:[%s443 + $0x18] sm:$0xff] %v450
                  %v452 = vld [vmem:[%s442 + $0x40] sm:$0xff]
                  %453 = vst [vmem:[%s443 + $0x20] sm:$0xff] %v452
                  %v454 = vld [vmem:[%s442 + $0x50] sm:$0xff]
                  %455 = vst [vmem:[%s443 + $0x28] sm:$0xff] %v454
                  %v456 = vld [vmem:[%s442 + $0x60] sm:$0xff]
                  %457 = vst [vmem:[%s443 + $0x30] sm:$0xff] %v456
                  %v458 = vld [vmem:[%s442 + $0x70] sm:$0xff]
                  %459 = vst [vmem:[%s443 + $0x38] sm:$0xff] %v458
                $region102: #{tpu_custom_call.1} parent=96 // loop_footer
                  %s441 = sadd.s32 1, %s437
                $region103: #{tpu_custom_call.1} parent=96 // loop_footer_branch
                  %436 = sbr.rel target = $region99
                $region104: #{tpu_custom_call.1} parent=96 // loop_exit
                  _
              $region97: #{tpu_custom_call.1} parent=81 // pred_fallthru
                _
              // Predicated region
              $region105: #{tpu_custom_call.1} parent=81 // pred_check
                _
              $region106: #{tpu_custom_call.1} parent=81 // pred_check_branch
                %461 = sbr.rel target = $region108
              $region107: #{tpu_custom_call.1} parent=81 // pred_region
                _
              $region108: #{tpu_custom_call.1} parent=81 // pred_fallthru
                _
            $region82: #{tpu_custom_call.1} parent=77 // pred_fallthru
              _
            // Predicated region
            $region83: #{tpu_custom_call.1} parent=77 // pred_check
              _
            $region84: #{tpu_custom_call.1} parent=77 // pred_check_branch
              %407 = sbr.rel target = $region86
            $region85: #{tpu_custom_call.1} parent=77 // pred_region
              %s409 = ssub.s32 256, 1
              loop: start=0, step=1, limit=1
              $region87: #{tpu_custom_call.1} parent=85 // loop_pre_header
                _
              $region88: #{tpu_custom_call.1} parent=85 // loop_header
                %s411 = sphi 0, %s415
                %p412 = scmp.ge.s32.totalorder %s411, 1
                %s416 = sphi %s401, %s401
                %s417 = sphi %s396, %s396
              $region89: #{tpu_custom_call.1} parent=85 // loop_header_branch
                %414 = sbr.rel (%p412) target = $region93
              $region90: #{tpu_custom_call.1} parent=85 // loop_body
                %v418 = vld [vmem:[%s416] sm:%s409]
                %419 = vst [vmem:[%s417] sm:%s409] %v418
                %v420 = vld [vmem:[%s416 + $0x10] sm:%s409]
                %421 = vst [vmem:[%s417 + $0x8] sm:%s409] %v420
                %v422 = vld [vmem:[%s416 + $0x20] sm:%s409]
                %423 = vst [vmem:[%s417 + $0x10] sm:%s409] %v422
                %v424 = vld [vmem:[%s416 + $0x30] sm:%s409]
                %425 = vst [vmem:[%s417 + $0x18] sm:%s409] %v424
                %v426 = vld [vmem:[%s416 + $0x40] sm:%s409]
                %427 = vst [vmem:[%s417 + $0x20] sm:%s409] %v426
                %v428 = vld [vmem:[%s416 + $0x50] sm:%s409]
                %429 = vst [vmem:[%s417 + $0x28] sm:%s409] %v428
                %v430 = vld [vmem:[%s416 + $0x60] sm:%s409]
                %431 = vst [vmem:[%s417 + $0x30] sm:%s409] %v430
                %v432 = vld [vmem:[%s416 + $0x70] sm:%s409]
                %433 = vst [vmem:[%s417 + $0x38] sm:%s409] %v432
              $region91: #{tpu_custom_call.1} parent=85 // loop_footer
                %s415 = sadd.s32 1, %s411
              $region92: #{tpu_custom_call.1} parent=85 // loop_footer_branch
                %410 = sbr.rel target = $region88
              $region93: #{tpu_custom_call.1} parent=85 // loop_exit
                _
            $region86: #{tpu_custom_call.1} parent=77 // pred_fallthru
              _
          $region78: #{tpu_custom_call.1} parent=73 // pred_fallthru
            _
          %462 = vnop
        $region74: #{tpu_custom_call.1} parent=31 // pred_fallthru
          _
        // Predicated region
        $region109: #{tpu_custom_call.1} parent=31 // pred_check
          %p463 = pneg %p111
        $region110: #{tpu_custom_call.1} parent=31 // pred_check_branch
          %465 = sbr.rel (%p463) target = $region112
        $region111: #{tpu_custom_call.1} parent=31 // pred_region
          %p466 = scmp.lt.s32.totalorder %s30, 1
          %s467 = scalar_select %p466, %s30, 1
          %s468 = smul.addr %s467, 8
          %s469 = scalar_lea.vmem %s2, %s468
        $region112: #{tpu_custom_call.1} parent=31 // pred_fallthru
          _
      $region32: #{tpu_custom_call.1} parent=5 // pred_fallthru
        _
      %p470 = scmp.le.s32.totalorder 1, %s23
      %p471 = scmp.lt.s32.totalorder %s23, 7
      %p472 = pnand %p470, %p471
      %p473 = pneg %p472
      // Predicated region
      $region113: #{tpu_custom_call.1} parent=5 // pred_check
        _
      $region114: #{tpu_custom_call.1} parent=5 // pred_check_branch
        %475 = sbr.rel (%p472) target = $region116
      $region115: #{tpu_custom_call.1} parent=5 // pred_region
        %s476 = ssub.s32 %s23, 1
        %s477 = sand.u32 %s50, 1
        %s478 = sand.u32 %s50, 1
        %s479 = smul.addr %s478, 64
        %s480 = scalar_lea.vmem [#allocation4], %s479
        // Predicated region
        $region117: #{tpu_custom_call.1} parent=115 // pred_check
          %p481 = pneg %p63
        $region118: #{tpu_custom_call.1} parent=115 // pred_check_branch
          %483 = sbr.rel (%p481) target = $region120
        $region119: #{tpu_custom_call.1} parent=115 // pred_region
          _
        $region120: #{tpu_custom_call.1} parent=115 // pred_fallthru
          _
        %s484 = sand.u32 %s78, 1
        %s485 = sand.u32 %s78, 1
        %s486 = smul.addr %s485, 64
        %s487 = scalar_lea.vmem [#allocation5], %s486
        // Predicated region
        $region121: #{tpu_custom_call.1} parent=115 // pred_check
          %p488 = pneg %p91
        $region122: #{tpu_custom_call.1} parent=115 // pred_check_branch
          %490 = sbr.rel (%p488) target = $region124
        $region123: #{tpu_custom_call.1} parent=115 // pred_region
          _
        $region124: #{tpu_custom_call.1} parent=115 // pred_fallthru
          _
        // Predicated region
        $region125: #{tpu_custom_call.1} parent=115 // pred_check
          %p491 = pneg %p138
        $region126: #{tpu_custom_call.1} parent=115 // pred_check_branch
          %493 = sbr.rel (%p491) target = $region128
        $region127: #{tpu_custom_call.1} parent=115 // pred_region
          %495 = dma.done [#allocation7], 1536
        $region128: #{tpu_custom_call.1} parent=115 // pred_fallthru
          _
        // Predicated region
        $region129: #{tpu_custom_call.1} parent=115 // pred_check
          %p496 = pneg %p159
        $region130: #{tpu_custom_call.1} parent=115 // pred_check_branch
          %498 = sbr.rel (%p496) target = $region132
        $region131: #{tpu_custom_call.1} parent=115 // pred_region
          %500 = dma.done [#allocation10], 48
        $region132: #{tpu_custom_call.1} parent=115 // pred_fallthru
          _
        // Predicated region
        $region133: #{tpu_custom_call.1} parent=115 // pred_check
          %p501 = pneg %p180
        $region134: #{tpu_custom_call.1} parent=115 // pred_check_branch
          %503 = sbr.rel (%p501) target = $region136
        $region135: #{tpu_custom_call.1} parent=115 // pred_region
          %505 = dma.done [#allocation10], 6144
        $region136: #{tpu_custom_call.1} parent=115 // pred_fallthru
          _
        %s506 = sand.u32 %s50, 1
        %s507 = sand.u32 %s50, 1
        %s508 = smul.addr %s507, 64
        %s509 = scalar_lea.vmem [#allocation4], %s508
        %p510 = pneg %p63
        %p511 = pneg %p60
        %s512 = sand.u32 %s78, 1
        %s513 = sand.u32 %s78, 1
        %s514 = smul.addr %s513, 64
        %s515 = scalar_lea.vmem [#allocation5], %s514
        %p516 = pneg %p91
        %p517 = pneg %p88
        %p518 = scmp.lt.s32.totalorder %s32, 1
        %s519 = scalar_select %p518, %s32, 1
        %s520 = smul.addr %s519, 8
        %s521 = scalar_lea.vmem %s2, %s520
        %p522 = pneg %p117
        %p523 = pneg %p114
        %p524 = pneg %p138
        %p525 = pneg %p135
        %p526 = pneg %p159
        %p527 = pneg %p156
        %p528 = pneg %p180
        %p529 = pneg %p177
        %p530 = pneg %p201
        %p531 = pneg %p198
        %p532 = pneg %p229
        %p533 = pneg %p226
        %s534 = sand.u32 %s216, 1
        %s535 = scalar_lea.sflag [#allocation8], %s534
        %s536 = sand.u32 %s216, 1
        %s537 = smul.addr %s536, 64
        %s538 = scalar_lea.vmem [#allocation12], %s537
        %p539 = pneg %p255
        %p540 = pneg %p252
        %s541 = sand.u32 %s242, 1
        %s542 = scalar_lea.sflag [#allocation14], %s541
        %s543 = sand.u32 %s242, 1
        %s544 = smul.addr %s543, 8
        %s545 = scalar_lea.vmem [#allocation13], %s544
        %s546 = smul.u32 8, %s33
        %s547 = smul.u32 8, %s33
        %p548 = scmp.lt.s32.totalorder %s32, 1
        %s549 = scalar_select %p548, %s32, 1
        %s550 = smul.addr %s549, 8
        %s551 = scalar_lea.vmem %s2, %s550
        %s552 = smul.u32 8, %s33
        %p553 = scmp.eq.s32.totalorder %s33, 0
        // Predicated region
        $region137: #{tpu_custom_call.1} parent=115 // pred_check
          %p554 = pneg %p553
        $region138: #{tpu_custom_call.1} parent=115 // pred_check_branch
          %556 = sbr.rel (%p554) target = $region140
        $region139: #{tpu_custom_call.1} parent=115 // pred_region
          %v557 = vld [vmem:[%s551] sm:$0xff]
          %558 = vst [vmem:[#allocation2] sm:$0xff] %v557
        $region140: #{tpu_custom_call.1} parent=115 // pred_fallthru
          _
        %v559 = vld [vmem:[%s480] sm:$0xff]
        %v560 = vld [vmem:[%s480 + $0x8] sm:$0xff]
        %v561 = vld [vmem:[%s480 + $0x10] sm:$0xff]
        %v562 = vld [vmem:[%s480 + $0x18] sm:$0xff]
        %v563 = vld [vmem:[%s480 + $0x20] sm:$0xff]
        %v564 = vld [vmem:[%s480 + $0x28] sm:$0xff]
        %v565 = vld [vmem:[%s480 + $0x30] sm:$0xff]
        %v566 = vld [vmem:[%s480 + $0x38] sm:$0xff]
        %v567 = vld [vmem:[#allocation6] sm:$0xff]
        %v568 = vld [vmem:[#allocation6 + $0x8] sm:$0xff]
        %v569 = vld [vmem:[#allocation6 + $0x10] sm:$0xff]
        %v570 = vld [vmem:[#allocation6 + $0x18] sm:$0xff]
        %v571 = vld [vmem:[#allocation6 + $0x20] sm:$0xff]
        %v572 = vld [vmem:[#allocation6 + $0x28] sm:$0xff]
        %v573 = vld [vmem:[#allocation6 + $0x30] sm:$0xff]
        %v574 = vld [vmem:[#allocation6 + $0x38] sm:$0xff]
        %v575 = vld [vmem:[#allocation6 + $0x40] sm:$0xff]
        %v576 = vld [vmem:[#allocation6 + $0x48] sm:$0xff]
        %v577 = vld [vmem:[#allocation6 + $0x50] sm:$0xff]
        %v578 = vld [vmem:[#allocation6 + $0x58] sm:$0xff]
        %v579 = vld [vmem:[#allocation9] sm:$0x7]
        %v581 = vperm.slane %v579, 0
        %v582 = vperm.slane %v579, 1
        %v583 = vperm.slane %v579, 2
        %vm587 = vcmask 261120
        %v589 = vsel %vm587, %v559, 0
        %v592 = vsel %vm587, %v560, 0
        %v595 = vsel %vm587, %v561, 0
        %v598 = vsel %vm587, %v562, 0
        %v601 = vsel %vm587, %v563, 0
        %v604 = vsel %vm587, %v564, 0
        %v607 = vsel %vm587, %v565, 0
        %v610 = vsel %vm587, %v566, 0
        %612 = vmatpush.msra.mxu0 0.0
        %613 = vmatpush.msra.mxu0 0.0
        %614 = vmatpush.msra.mxu0 0.0
        %615 = vmatpush.msra.mxu0 0.0
        %616 = vmatpush.msra.mxu0 0.0
        %617 = vmatpush.msra.mxu0 0.0
        %618 = vmatpush.msra.mxu0 0.0
        %619 = vmatpush.msra.mxu0 0.0
        %620 = vmatpush.msra.mxu0 0.0
        %621 = vmatpush.msra.mxu0 0.0
        %622 = vmatpush.msra.mxu0 0.0
        %623 = vmatpush.msra.mxu0 0.0
        %624 = vmatpush.msra.mxu0 %v576
        %625 = vmatpush.msra.mxu0 %v573
        %626 = vmatpush.msra.mxu0 %v570
        %627 = vmatpush.msra.mxu0 %v567
        %628 = vmatmul.f32.gmra.mxu0 %v589
        %v629 = vpop.f32.mrf.mxu0
        %v630 = vadd.f32 %v581, %v629
        %631 = vmatmul.f32.gmra.mxu0 %v592
        %v632 = vpop.f32.mrf.mxu0
        %v633 = vadd.f32 %v581, %v632
        %634 = vmatmul.f32.gmra.mxu0 %v595
        %v635 = vpop.f32.mrf.mxu0
        %v636 = vadd.f32 %v581, %v635
        %637 = vmatmul.f32.gmra.mxu0 %v598
        %v638 = vpop.f32.mrf.mxu0
        %v639 = vadd.f32 %v581, %v638
        %640 = vmatmul.f32.gmra.mxu0 %v601
        %v641 = vpop.f32.mrf.mxu0
        %v642 = vadd.f32 %v581, %v641
        %643 = vmatmul.f32.gmra.mxu0 %v604
        %v644 = vpop.f32.mrf.mxu0
        %v645 = vadd.f32 %v581, %v644
        %646 = vmatmul.f32.gmra.mxu0 %v607
        %v647 = vpop.f32.mrf.mxu0
        %v648 = vadd.f32 %v581, %v647
        %649 = vmatmul.f32.gmra.mxu0 %v610
        %v650 = vpop.f32.mrf.mxu0
        %v651 = vadd.f32 %v581, %v650
        %652 = vdwg.mxu0
        %653 = vmatpush.msra.mxu0 0.0
        %654 = vmatpush.msra.mxu0 0.0
        %655 = vmatpush.msra.mxu0 0.0
        %656 = vmatpush.msra.mxu0 0.0
        %657 = vmatpush.msra.mxu0 0.0
        %658 = vmatpush.msra.mxu0 0.0
        %659 = vmatpush.msra.mxu0 0.0
        %660 = vmatpush.msra.mxu0 0.0
        %661 = vmatpush.msra.mxu0 0.0
        %662 = vmatpush.msra.mxu0 0.0
        %663 = vmatpush.msra.mxu0 0.0
        %664 = vmatpush.msra.mxu0 0.0
        %665 = vmatpush.msra.mxu0 %v577
        %666 = vmatpush.msra.mxu0 %v574
        %667 = vmatpush.msra.mxu0 %v571
        %668 = vmatpush.msra.mxu0 %v568
        %669 = vmatmul.f32.gmra.mxu0 %v589
        %v670 = vpop.f32.mrf.mxu0
        %v671 = vadd.f32 %v582, %v670
        %672 = vmatmul.f32.gmra.mxu0 %v592
        %v673 = vpop.f32.mrf.mxu0
        %v674 = vadd.f32 %v582, %v673
        %675 = vmatmul.f32.gmra.mxu0 %v595
        %v676 = vpop.f32.mrf.mxu0
        %v677 = vadd.f32 %v582, %v676
        %678 = vmatmul.f32.gmra.mxu0 %v598
        %v679 = vpop.f32.mrf.mxu0
        %v680 = vadd.f32 %v582, %v679
        %681 = vmatmul.f32.gmra.mxu0 %v601
        %v682 = vpop.f32.mrf.mxu0
        %v683 = vadd.f32 %v582, %v682
        %684 = vmatmul.f32.gmra.mxu0 %v604
        %v685 = vpop.f32.mrf.mxu0
        %v686 = vadd.f32 %v582, %v685
        %687 = vmatmul.f32.gmra.mxu0 %v607
        %v688 = vpop.f32.mrf.mxu0
        %v689 = vadd.f32 %v582, %v688
        %690 = vmatmul.f32.gmra.mxu0 %v610
        %v691 = vpop.f32.mrf.mxu0
        %v692 = vadd.f32 %v582, %v691
        %693 = vdwg.mxu0
        %694 = vmatpush.msra.mxu0 0.0
        %695 = vmatpush.msra.mxu0 0.0
        %696 = vmatpush.msra.mxu0 0.0
        %697 = vmatpush.msra.mxu0 0.0
        %698 = vmatpush.msra.mxu0 0.0
        %699 = vmatpush.msra.mxu0 0.0
        %700 = vmatpush.msra.mxu0 0.0
        %701 = vmatpush.msra.mxu0 0.0
        %702 = vmatpush.msra.mxu0 0.0
        %703 = vmatpush.msra.mxu0 0.0
        %704 = vmatpush.msra.mxu0 0.0
        %705 = vmatpush.msra.mxu0 0.0
        %706 = vmatpush.msra.mxu0 %v578
        %707 = vmatpush.msra.mxu0 %v575
        %708 = vmatpush.msra.mxu0 %v572
        %709 = vmatpush.msra.mxu0 %v569
        %710 = vmatmul.f32.gmra.mxu0 %v589
        %v711 = vpop.f32.mrf.mxu0
        %v712 = vadd.f32 %v583, %v711
        %713 = vmatmul.f32.gmra.mxu0 %v592
        %v714 = vpop.f32.mrf.mxu0
        %v715 = vadd.f32 %v583, %v714
        %716 = vmatmul.f32.gmra.mxu0 %v595
        %v717 = vpop.f32.mrf.mxu0
        %v718 = vadd.f32 %v583, %v717
        %719 = vmatmul.f32.gmra.mxu0 %v598
        %v720 = vpop.f32.mrf.mxu0
        %v721 = vadd.f32 %v583, %v720
        %722 = vmatmul.f32.gmra.mxu0 %v601
        %v723 = vpop.f32.mrf.mxu0
        %v724 = vadd.f32 %v583, %v723
        %725 = vmatmul.f32.gmra.mxu0 %v604
        %v726 = vpop.f32.mrf.mxu0
        %v727 = vadd.f32 %v583, %v726
        %728 = vmatmul.f32.gmra.mxu0 %v607
        %v729 = vpop.f32.mrf.mxu0
        %v730 = vadd.f32 %v583, %v729
        %731 = vmatmul.f32.gmra.mxu0 %v610
        %v732 = vpop.f32.mrf.mxu0
        %v733 = vadd.f32 %v583, %v732
        %734 = vdwg.mxu0
        %735 = vst [vmem:[#allocation3] sm:$0xff] %v630
        %736 = vst [vmem:[#allocation3 + $0x8] sm:$0xff] %v671
        %737 = vst [vmem:[#allocation3 + $0x10] sm:$0xff] %v712
        %738 = vst [vmem:[#allocation3 + $0x18] sm:$0xff] %v633
        %739 = vst [vmem:[#allocation3 + $0x20] sm:$0xff] %v674
        %740 = vst [vmem:[#allocation3 + $0x28] sm:$0xff] %v715
        %741 = vst [vmem:[#allocation3 + $0x30] sm:$0xff] %v636
        %742 = vst [vmem:[#allocation3 + $0x38] sm:$0xff] %v677
        %743 = vst [vmem:[#allocation3 + $0x40] sm:$0xff] %v718
        %744 = vst [vmem:[#allocation3 + $0x48] sm:$0xff] %v639
        %745 = vst [vmem:[#allocation3 + $0x50] sm:$0xff] %v680
        %746 = vst [vmem:[#allocation3 + $0x58] sm:$0xff] %v721
        %747 = vst [vmem:[#allocation3 + $0x60] sm:$0xff] %v642
        %748 = vst [vmem:[#allocation3 + $0x68] sm:$0xff] %v683
        %749 = vst [vmem:[#allocation3 + $0x70] sm:$0xff] %v724
        %750 = vst [vmem:[#allocation3 + $0x78] sm:$0xff] %v645
        %751 = vst [vmem:[#allocation3 + $0x80] sm:$0xff] %v686
        %752 = vst [vmem:[#allocation3 + $0x88] sm:$0xff] %v727
        %753 = vst [vmem:[#allocation3 + $0x90] sm:$0xff] %v648
        %754 = vst [vmem:[#allocation3 + $0x98] sm:$0xff] %v689
        %755 = vst [vmem:[#allocation3 + $0xa0] sm:$0xff] %v730
        %756 = vst [vmem:[#allocation3 + $0xa8] sm:$0xff] %v651
        %757 = vst [vmem:[#allocation3 + $0xb0] sm:$0xff] %v692
        %758 = vst [vmem:[#allocation3 + $0xb8] sm:$0xff] %v733
        %v759 = vld [vmem:[%s6] sm:$0x7]
        %p760 = scmp.eq.s32.totalorder %s33, 2
        %v761 = vld [vmem:[#allocation2] sm:$0xff]
        %v762 = vld [vmem:[#allocation3] sm:$0xff]
        %v763 = vld [vmem:[#allocation3 + $0x8] sm:$0xff]
        %v764 = vld [vmem:[#allocation3 + $0x10] sm:$0xff]
        %v765 = vld [vmem:[%s487] sm:$0xff]
        %v766 = vld [vmem:[#allocation11] sm:$0xff]
        %v767 = vld [vmem:[#allocation11 + $0x8] sm:$0xff]
        %v768 = vld [vmem:[#allocation11 + $0x10] sm:$0xff]
        %v769 = vld [vmem:[#allocation11 + $0x18] sm:$0xff]
        %v770 = vld [vmem:[#allocation11 + $0x20] sm:$0xff]
        %v771 = vld [vmem:[#allocation11 + $0x28] sm:$0xff]
        %v772 = vld [vmem:[#allocation11 + $0x30] sm:$0xff]
        %v773 = vld [vmem:[#allocation11 + $0x38] sm:$0xff]
        %v774 = vld [vmem:[#allocation11 + $0x40] sm:$0xff]
        %v775 = vld [vmem:[#allocation11 + $0x48] sm:$0xff]
        %v776 = vld [vmem:[#allocation11 + $0x50] sm:$0xff]
        %v777 = vld [vmem:[#allocation11 + $0x58] sm:$0xff]
        %v778 = vld [vmem:[#allocation11 + $0x60] sm:$0xff]
        %v779 = vld [vmem:[#allocation11 + $0x68] sm:$0xff]
        %v780 = vld [vmem:[#allocation11 + $0x70] sm:$0xff]
        %v781 = vld [vmem:[#allocation11 + $0x78] sm:$0xff]
        %v782 = vld [vmem:[#allocation11 + $0x80] sm:$0xff]
        %v783 = vld [vmem:[#allocation11 + $0x88] sm:$0xff]
        %v784 = vld [vmem:[#allocation11 + $0x90] sm:$0xff]
        %v785 = vld [vmem:[#allocation11 + $0x98] sm:$0xff]
        %v786 = vld [vmem:[#allocation11 + $0xa0] sm:$0xff]
        %v787 = vld [vmem:[#allocation11 + $0xa8] sm:$0xff]
        %v788 = vld [vmem:[#allocation11 + $0xb0] sm:$0xff]
        %v789 = vld [vmem:[#allocation11 + $0xb8] sm:$0xff]
        %v790 = vld [vmem:[#allocation11 + $0xc0] sm:$0xff]
        %v791 = vld [vmem:[#allocation11 + $0xc8] sm:$0xff]
        %v792 = vld [vmem:[#allocation11 + $0xd0] sm:$0xff]
        %v793 = vld [vmem:[#allocation11 + $0xd8] sm:$0xff]
        %v794 = vld [vmem:[#allocation11 + $0xe0] sm:$0xff]
        %v795 = vld [vmem:[#allocation11 + $0xe8] sm:$0xff]
        %v796 = vld [vmem:[#allocation11 + $0xf0] sm:$0xff]
        %v797 = vld [vmem:[#allocation11 + $0xf8] sm:$0xff]
        %v798 = vld [vmem:[#allocation11 + $0x100] sm:$0xff]
        %v799 = vld [vmem:[#allocation11 + $0x108] sm:$0xff]
        %v800 = vld [vmem:[#allocation11 + $0x110] sm:$0xff]
        %v801 = vld [vmem:[#allocation11 + $0x118] sm:$0xff]
        %v802 = vld [vmem:[#allocation11 + $0x120] sm:$0xff]
        %v803 = vld [vmem:[#allocation11 + $0x128] sm:$0xff]
        %v804 = vld [vmem:[#allocation11 + $0x130] sm:$0xff]
        %v805 = vld [vmem:[#allocation11 + $0x138] sm:$0xff]
        %v806 = vld [vmem:[#allocation11 + $0x140] sm:$0xff]
        %v807 = vld [vmem:[#allocation11 + $0x148] sm:$0xff]
        %v808 = vld [vmem:[#allocation11 + $0x150] sm:$0xff]
        %v809 = vld [vmem:[#allocation11 + $0x158] sm:$0xff]
        %v810 = vld [vmem:[#allocation11 + $0x160] sm:$0xff]
        %v811 = vld [vmem:[#allocation11 + $0x168] sm:$0xff]
        %v812 = vld [vmem:[#allocation11 + $0x170] sm:$0xff]
        %v813 = vld [vmem:[#allocation11 + $0x178] sm:$0xff]
        %v815 = vperm.slane %v759, 0
        %v816 = vperm.slane %v759, 1
        %v817 = vperm.slane %v759, 2
        %821 = vmatpush.msra.mxu0 %v811
        %822 = vmatpush.msra.mxu0 %v808
        %823 = vmatpush.msra.mxu0 %v805
        %824 = vmatpush.msra.mxu0 %v802
        %825 = vmatpush.msra.mxu0 %v799
        %826 = vmatpush.msra.mxu0 %v796
        %827 = vmatpush.msra.mxu0 %v793
        %828 = vmatpush.msra.mxu0 %v790
        %829 = vmatpush.msra.mxu0 %v787
        %830 = vmatpush.msra.mxu0 %v784
        %831 = vmatpush.msra.mxu0 %v781
        %832 = vmatpush.msra.mxu0 %v778
        %833 = vmatpush.msra.mxu0 %v775
        %834 = vmatpush.msra.mxu0 %v772
        %835 = vmatpush.msra.mxu0 %v769
        %836 = vmatpush.msra.mxu0 %v766
        %837 = vmatmul.f32.gmra.mxu0 %v761
        %v838 = vpop.f32.mrf.mxu0
        %v839 = vadd.f32 %v815, %v838
        %840 = vdwg.mxu0
        %841 = vmatpush.msra.mxu0 %v812
        %842 = vmatpush.msra.mxu0 %v809
        %843 = vmatpush.msra.mxu0 %v806
        %844 = vmatpush.msra.mxu0 %v803
        %845 = vmatpush.msra.mxu0 %v800
        %846 = vmatpush.msra.mxu0 %v797
        %847 = vmatpush.msra.mxu0 %v794
        %848 = vmatpush.msra.mxu0 %v791
        %849 = vmatpush.msra.mxu0 %v788
        %850 = vmatpush.msra.mxu0 %v785
        %851 = vmatpush.msra.mxu0 %v782
        %852 = vmatpush.msra.mxu0 %v779
        %853 = vmatpush.msra.mxu0 %v776
        %854 = vmatpush.msra.mxu0 %v773
        %855 = vmatpush.msra.mxu0 %v770
        %856 = vmatpush.msra.mxu0 %v767
        %857 = vmatmul.f32.gmra.mxu0 %v761
        %v858 = vpop.f32.mrf.mxu0
        %v859 = vadd.f32 %v816, %v858
        %860 = vdwg.mxu0
        %861 = vmatpush.msra.mxu0 %v813
        %862 = vmatpush.msra.mxu0 %v810
        %863 = vmatpush.msra.mxu0 %v807
        %864 = vmatpush.msra.mxu0 %v804
        %865 = vmatpush.msra.mxu0 %v801
        %866 = vmatpush.msra.mxu0 %v798
        %867 = vmatpush.msra.mxu0 %v795
        %868 = vmatpush.msra.mxu0 %v792
        %869 = vmatpush.msra.mxu0 %v789
        %870 = vmatpush.msra.mxu0 %v786
        %871 = vmatpush.msra.mxu0 %v783
        %872 = vmatpush.msra.mxu0 %v780
        %873 = vmatpush.msra.mxu0 %v777
        %874 = vmatpush.msra.mxu0 %v774
        %875 = vmatpush.msra.mxu0 %v771
        %876 = vmatpush.msra.mxu0 %v768
        %877 = vmatmul.f32.gmra.mxu0 %v761
        %v878 = vpop.f32.mrf.mxu0
        %v879 = vadd.f32 %v817, %v878
        %880 = vdwg.mxu0
        %v881 = vadd.f32 %v762, %v839
        %v882 = vadd.f32 %v763, %v859
        %v883 = vmul.f32 %v881, 0.5
        %v884 = vmul.f32 %v882, 0.5
        %v885 = vtanh.pop %v883
        %v886 = vtanh.pop %v884
        %v887 = vmul.f32 %v885, 0.5
        %v888 = vmul.f32 %v886, 0.5
        %v889 = vadd.f32 %v887, 0.5
        %v890 = vadd.f32 %v888, 0.5
        %892 = vset.pattern.permute.xlu0 0
        %893 = vperm.xlu0 %892, %v765
        %v894 = vpop.permute.xlu0 %893
        %v896 = vmul.f32 %v894, %v890
        %v897 = vmul.f32 %v889, %v879
        %v898 = vadd.f32 %v764, %v897
        %v899 = vtanh.pop %v898
        %v900 = vsub.f32 1.0, %v896
        %v901 = vmul.f32 %v900, %v899
        %v902 = vmul.f32 %v896, %v761
        %v903 = vadd.f32 %v901, %v902
        %904 = vst [vmem:[%s538] sm:$0xff] %v903
        %v905 = vld [vmem:[#allocation3 + $0x18] sm:$0xff]
        %v906 = vld [vmem:[#allocation3 + $0x20] sm:$0xff]
        %v907 = vld [vmem:[#allocation3 + $0x28] sm:$0xff]
        %s908 = scalar_lea.vmem %s487, 8 [#allocation5]
        %v909 = vld [vmem:[%s908] sm:$0xff]
        %v910 = vld [vmem:[#allocation11] sm:$0xff]
        %v911 = vld [vmem:[#allocation11 + $0x8] sm:$0xff]
        %v912 = vld [vmem:[#allocation11 + $0x10] sm:$0xff]
        %v913 = vld [vmem:[#allocation11 + $0x18] sm:$0xff]
        %v914 = vld [vmem:[#allocation11 + $0x20] sm:$0xff]
        %v915 = vld [vmem:[#allocation11 + $0x28] sm:$0xff]
        %v916 = vld [vmem:[#allocation11 + $0x30] sm:$0xff]
        %v917 = vld [vmem:[#allocation11 + $0x38] sm:$0xff]
        %v918 = vld [vmem:[#allocation11 + $0x40] sm:$0xff]
        %v919 = vld [vmem:[#allocation11 + $0x48] sm:$0xff]
        %v920 = vld [vmem:[#allocation11 + $0x50] sm:$0xff]
        %v921 = vld [vmem:[#allocation11 + $0x58] sm:$0xff]
        %v922 = vld [vmem:[#allocation11 + $0x60] sm:$0xff]
        %v923 = vld [vmem:[#allocation11 + $0x68] sm:$0xff]
        %v924 = vld [vmem:[#allocation11 + $0x70] sm:$0xff]
        %v925 = vld [vmem:[#allocation11 + $0x78] sm:$0xff]
        %v926 = vld [vmem:[#allocation11 + $0x80] sm:$0xff]
        %v927 = vld [vmem:[#allocation11 + $0x88] sm:$0xff]
        %v928 = vld [vmem:[#allocation11 + $0x90] sm:$0xff]
        %v929 = vld [vmem:[#allocation11 + $0x98] sm:$0xff]
        %v930 = vld [vmem:[#allocation11 + $0xa0] sm:$0xff]
        %v931 = vld [vmem:[#allocation11 + $0xa8] sm:$0xff]
        %v932 = vld [vmem:[#allocation11 + $0xb0] sm:$0xff]
        %v933 = vld [vmem:[#allocation11 + $0xb8] sm:$0xff]
        %v934 = vld [vmem:[#allocation11 + $0xc0] sm:$0xff]
        %v935 = vld [vmem:[#allocation11 + $0xc8] sm:$0xff]
        %v936 = vld [vmem:[#allocation11 + $0xd0] sm:$0xff]
        %v937 = vld [vmem:[#allocation11 + $0xd8] sm:$0xff]
        %v938 = vld [vmem:[#allocation11 + $0xe0] sm:$0xff]
        %v939 = vld [vmem:[#allocation11 + $0xe8] sm:$0xff]
        %v940 = vld [vmem:[#allocation11 + $0xf0] sm:$0xff]
        %v941 = vld [vmem:[#allocation11 + $0xf8] sm:$0xff]
        %v942 = vld [vmem:[#allocation11 + $0x100] sm:$0xff]
        %v943 = vld [vmem:[#allocation11 + $0x108] sm:$0xff]
        %v944 = vld [vmem:[#allocation11 + $0x110] sm:$0xff]
        %v945 = vld [vmem:[#allocation11 + $0x118] sm:$0xff]
        %v946 = vld [vmem:[#allocation11 + $0x120] sm:$0xff]
        %v947 = vld [vmem:[#allocation11 + $0x128] sm:$0xff]
        %v948 = vld [vmem:[#allocation11 + $0x130] sm:$0xff]
        %v949 = vld [vmem:[#allocation11 + $0x138] sm:$0xff]
        %v950 = vld [vmem:[#allocation11 + $0x140] sm:$0xff]
        %v951 = vld [vmem:[#allocation11 + $0x148] sm:$0xff]
        %v952 = vld [vmem:[#allocation11 + $0x150] sm:$0xff]
        %v953 = vld [vmem:[#allocation11 + $0x158] sm:$0xff]
        %v954 = vld [vmem:[#allocation11 + $0x160] sm:$0xff]
        %v955 = vld [vmem:[#allocation11 + $0x168] sm:$0xff]
        %v956 = vld [vmem:[#allocation11 + $0x170] sm:$0xff]
        %v957 = vld [vmem:[#allocation11 + $0x178] sm:$0xff]
        %958 = vmatpush.msra.mxu0 %v955
        %959 = vmatpush.msra.mxu0 %v952
        %960 = vmatpush.msra.mxu0 %v949
        %961 = vmatpush.msra.mxu0 %v946
        %962 = vmatpush.msra.mxu0 %v943
        %963 = vmatpush.msra.mxu0 %v940
        %964 = vmatpush.msra.mxu0 %v937
        %965 = vmatpush.msra.mxu0 %v934
        %966 = vmatpush.msra.mxu0 %v931
        %967 = vmatpush.msra.mxu0 %v928
        %968 = vmatpush.msra.mxu0 %v925
        %969 = vmatpush.msra.mxu0 %v922
        %970 = vmatpush.msra.mxu0 %v919
        %971 = vmatpush.msra.mxu0 %v916
        %972 = vmatpush.msra.mxu0 %v913
        %973 = vmatpush.msra.mxu0 %v910
        %974 = vmatmul.f32.gmra.mxu0 %v903
        %v975 = vpop.f32.mrf.mxu0
        %v976 = vadd.f32 %v815, %v975
        %977 = vdwg.mxu0
        %978 = vmatpush.msra.mxu0 %v956
        %979 = vmatpush.msra.mxu0 %v953
        %980 = vmatpush.msra.mxu0 %v950
        %981 = vmatpush.msra.mxu0 %v947
        %982 = vmatpush.msra.mxu0 %v944
        %983 = vmatpush.msra.mxu0 %v941
        %984 = vmatpush.msra.mxu0 %v938
        %985 = vmatpush.msra.mxu0 %v935
        %986 = vmatpush.msra.mxu0 %v932
        %987 = vmatpush.msra.mxu0 %v929
        %988 = vmatpush.msra.mxu0 %v926
        %989 = vmatpush.msra.mxu0 %v923
        %990 = vmatpush.msra.mxu0 %v920
        %991 = vmatpush.msra.mxu0 %v917
        %992 = vmatpush.msra.mxu0 %v914
        %993 = vmatpush.msra.mxu0 %v911
        %994 = vmatmul.f32.gmra.mxu0 %v903
        %v995 = vpop.f32.mrf.mxu0
        %v996 = vadd.f32 %v816, %v995
        %997 = vdwg.mxu0
        %998 = vmatpush.msra.mxu0 %v957
        %999 = vmatpush.msra.mxu0 %v954
        %1000 = vmatpush.msra.mxu0 %v951
        %1001 = vmatpush.msra.mxu0 %v948
        %1002 = vmatpush.msra.mxu0 %v945
        %1003 = vmatpush.msra.mxu0 %v942
        %1004 = vmatpush.msra.mxu0 %v939
        %1005 = vmatpush.msra.mxu0 %v936
        %1006 = vmatpush.msra.mxu0 %v933
        %1007 = vmatpush.msra.mxu0 %v930
        %1008 = vmatpush.msra.mxu0 %v927
        %1009 = vmatpush.msra.mxu0 %v924
        %1010 = vmatpush.msra.mxu0 %v921
        %1011 = vmatpush.msra.mxu0 %v918
        %1012 = vmatpush.msra.mxu0 %v915
        %1013 = vmatpush.msra.mxu0 %v912
        %1014 = vmatmul.f32.gmra.mxu0 %v903
        %v1015 = vpop.f32.mrf.mxu0
        %v1016 = vadd.f32 %v817, %v1015
        %1017 = vdwg.mxu0
        %v1018 = vadd.f32 %v905, %v976
        %v1019 = vadd.f32 %v906, %v996
        %v1020 = vmul.f32 %v1018, 0.5
        %v1021 = vmul.f32 %v1019, 0.5
        %v1022 = vtanh.pop %v1020
        %v1023 = vtanh.pop %v1021
        %v1024 = vmul.f32 %v1022, 0.5
        %v1025 = vmul.f32 %v1023, 0.5
        %v1026 = vadd.f32 %v1024, 0.5
        %v1027 = vadd.f32 %v1025, 0.5
        %1029 = vset.pattern.permute.xlu0 0
        %1030 = vperm.xlu0 %1029, %v909
        %v1031 = vpop.permute.xlu0 %1030
        %v1033 = vmul.f32 %v1031, %v1027
        %v1034 = vmul.f32 %v1026, %v1016
        %v1035 = vadd.f32 %v907, %v1034
        %v1036 = vtanh.pop %v1035
        %v1037 = vsub.f32 1.0, %v1033
        %v1038 = vmul.f32 %v1037, %v1036
        %v1039 = vmul.f32 %v1033, %v903
        %v1040 = vadd.f32 %v1038, %v1039
        %s1041 = scalar_lea.vmem %s538, 8 [#allocation12]
        %1042 = vst [vmem:[%s1041] sm:$0xff] %v1040
        %v1043 = vld [vmem:[#allocation3 + $0x30] sm:$0xff]
        %v1044 = vld [vmem:[#allocation3 + $0x38] sm:$0xff]
        %v1045 = vld [vmem:[#allocation3 + $0x40] sm:$0xff]
        %s1046 = scalar_lea.vmem %s487, 16 [#allocation5]
        %v1047 = vld [vmem:[%s1046] sm:$0xff]
        %v1048 = vld [vmem:[#allocation11] sm:$0xff]
        %v1049 = vld [vmem:[#allocation11 + $0x8] sm:$0xff]
        %v1050 = vld [vmem:[#allocation11 + $0x10] sm:$0xff]
        %v1051 = vld [vmem:[#allocation11 + $0x18] sm:$0xff]
        %v1052 = vld [vmem:[#allocation11 + $0x20] sm:$0xff]
        %v1053 = vld [vmem:[#allocation11 + $0x28] sm:$0xff]
        %v1054 = vld [vmem:[#allocation11 + $0x30] sm:$0xff]
        %v1055 = vld [vmem:[#allocation11 + $0x38] sm:$0xff]
        %v1056 = vld [vmem:[#allocation11 + $0x40] sm:$0xff]
        %v1057 = vld [vmem:[#allocation11 + $0x48] sm:$0xff]
        %v1058 = vld [vmem:[#allocation11 + $0x50] sm:$0xff]
        %v1059 = vld [vmem:[#allocation11 + $0x58] sm:$0xff]
        %v1060 = vld [vmem:[#allocation11 + $0x60] sm:$0xff]
        %v1061 = vld [vmem:[#allocation11 + $0x68] sm:$0xff]
        %v1062 = vld [vmem:[#allocation11 + $0x70] sm:$0xff]
        %v1063 = vld [vmem:[#allocation11 + $0x78] sm:$0xff]
        %v1064 = vld [vmem:[#allocation11 + $0x80] sm:$0xff]
        %v1065 = vld [vmem:[#allocation11 + $0x88] sm:$0xff]
        %v1066 = vld [vmem:[#allocation11 + $0x90] sm:$0xff]
        %v1067 = vld [vmem:[#allocation11 + $0x98] sm:$0xff]
        %v1068 = vld [vmem:[#allocation11 + $0xa0] sm:$0xff]
        %v1069 = vld [vmem:[#allocation11 + $0xa8] sm:$0xff]
        %v1070 = vld [vmem:[#allocation11 + $0xb0] sm:$0xff]
        %v1071 = vld [vmem:[#allocation11 + $0xb8] sm:$0xff]
        %v1072 = vld [vmem:[#allocation11 + $0xc0] sm:$0xff]
        %v1073 = vld [vmem:[#allocation11 + $0xc8] sm:$0xff]
        %v1074 = vld [vmem:[#allocation11 + $0xd0] sm:$0xff]
        %v1075 = vld [vmem:[#allocation11 + $0xd8] sm:$0xff]
        %v1076 = vld [vmem:[#allocation11 + $0xe0] sm:$0xff]
        %v1077 = vld [vmem:[#allocation11 + $0xe8] sm:$0xff]
        %v1078 = vld [vmem:[#allocation11 + $0xf0] sm:$0xff]
        %v1079 = vld [vmem:[#allocation11 + $0xf8] sm:$0xff]
        %v1080 = vld [vmem:[#allocation11 + $0x100] sm:$0xff]
        %v1081 = vld [vmem:[#allocation11 + $0x108] sm:$0xff]
        %v1082 = vld [vmem:[#allocation11 + $0x110] sm:$0xff]
        %v1083 = vld [vmem:[#allocation11 + $0x118] sm:$0xff]
        %v1084 = vld [vmem:[#allocation11 + $0x120] sm:$0xff]
        %v1085 = vld [vmem:[#allocation11 + $0x128] sm:$0xff]
        %v1086 = vld [vmem:[#allocation11 + $0x130] sm:$0xff]
        %v1087 = vld [vmem:[#allocation11 + $0x138] sm:$0xff]
        %v1088 = vld [vmem:[#allocation11 + $0x140] sm:$0xff]
        %v1089 = vld [vmem:[#allocation11 + $0x148] sm:$0xff]
        %v1090 = vld [vmem:[#allocation11 + $0x150] sm:$0xff]
        %v1091 = vld [vmem:[#allocation11 + $0x158] sm:$0xff]
        %v1092 = vld [vmem:[#allocation11 + $0x160] sm:$0xff]
        %v1093 = vld [vmem:[#allocation11 + $0x168] sm:$0xff]
        %v1094 = vld [vmem:[#allocation11 + $0x170] sm:$0xff]
        %v1095 = vld [vmem:[#allocation11 + $0x178] sm:$0xff]
        %1096 = vmatpush.msra.mxu0 %v1093
        %1097 = vmatpush.msra.mxu0 %v1090
        %1098 = vmatpush.msra.mxu0 %v1087
        %1099 = vmatpush.msra.mxu0 %v1084
        %1100 = vmatpush.msra.mxu0 %v1081
        %1101 = vmatpush.msra.mxu0 %v1078
        %1102 = vmatpush.msra.mxu0 %v1075
        %1103 = vmatpush.msra.mxu0 %v1072
        %1104 = vmatpush.msra.mxu0 %v1069
        %1105 = vmatpush.msra.mxu0 %v1066
        %1106 = vmatpush.msra.mxu0 %v1063
        %1107 = vmatpush.msra.mxu0 %v1060
        %1108 = vmatpush.msra.mxu0 %v1057
        %1109 = vmatpush.msra.mxu0 %v1054
        %1110 = vmatpush.msra.mxu0 %v1051
        %1111 = vmatpush.msra.mxu0 %v1048
        %1112 = vmatmul.f32.gmra.mxu0 %v1040
        %v1113 = vpop.f32.mrf.mxu0
        %v1114 = vadd.f32 %v815, %v1113
        %1115 = vdwg.mxu0
        %1116 = vmatpush.msra.mxu0 %v1094
        %1117 = vmatpush.msra.mxu0 %v1091
        %1118 = vmatpush.msra.mxu0 %v1088
        %1119 = vmatpush.msra.mxu0 %v1085
        %1120 = vmatpush.msra.mxu0 %v1082
        %1121 = vmatpush.msra.mxu0 %v1079
        %1122 = vmatpush.msra.mxu0 %v1076
        %1123 = vmatpush.msra.mxu0 %v1073
        %1124 = vmatpush.msra.mxu0 %v1070
        %1125 = vmatpush.msra.mxu0 %v1067
        %1126 = vmatpush.msra.mxu0 %v1064
        %1127 = vmatpush.msra.mxu0 %v1061
        %1128 = vmatpush.msra.mxu0 %v1058
        %1129 = vmatpush.msra.mxu0 %v1055
        %1130 = vmatpush.msra.mxu0 %v1052
        %1131 = vmatpush.msra.mxu0 %v1049
        %1132 = vmatmul.f32.gmra.mxu0 %v1040
        %v1133 = vpop.f32.mrf.mxu0
        %v1134 = vadd.f32 %v816, %v1133
        %1135 = vdwg.mxu0
        %1136 = vmatpush.msra.mxu0 %v1095
        %1137 = vmatpush.msra.mxu0 %v1092
        %1138 = vmatpush.msra.mxu0 %v1089
        %1139 = vmatpush.msra.mxu0 %v1086
        %1140 = vmatpush.msra.mxu0 %v1083
        %1141 = vmatpush.msra.mxu0 %v1080
        %1142 = vmatpush.msra.mxu0 %v1077
        %1143 = vmatpush.msra.mxu0 %v1074
        %1144 = vmatpush.msra.mxu0 %v1071
        %1145 = vmatpush.msra.mxu0 %v1068
        %1146 = vmatpush.msra.mxu0 %v1065
        %1147 = vmatpush.msra.mxu0 %v1062
        %1148 = vmatpush.msra.mxu0 %v1059
        %1149 = vmatpush.msra.mxu0 %v1056
        %1150 = vmatpush.msra.mxu0 %v1053
        %1151 = vmatpush.msra.mxu0 %v1050
        %1152 = vmatmul.f32.gmra.mxu0 %v1040
        %v1153 = vpop.f32.mrf.mxu0
        %v1154 = vadd.f32 %v817, %v1153
        %1155 = vdwg.mxu0
        %v1156 = vadd.f32 %v1043, %v1114
        %v1157 = vadd.f32 %v1044, %v1134
        %v1158 = vmul.f32 %v1156, 0.5
        %v1159 = vmul.f32 %v1157, 0.5
        %v1160 = vtanh.pop %v1158
        %v1161 = vtanh.pop %v1159
        %v1162 = vmul.f32 %v1160, 0.5
        %v1163 = vmul.f32 %v1161, 0.5
        %v1164 = vadd.f32 %v1162, 0.5
        %v1165 = vadd.f32 %v1163, 0.5
        %1167 = vset.pattern.permute.xlu0 0
        %1168 = vperm.xlu0 %1167, %v1047
        %v1169 = vpop.permute.xlu0 %1168
        %v1171 = vmul.f32 %v1169, %v1165
        %v1172 = vmul.f32 %v1164, %v1154
        %v1173 = vadd.f32 %v1045, %v1172
        %v1174 = vtanh.pop %v1173
        %v1175 = vsub.f32 1.0, %v1171
        %v1176 = vmul.f32 %v1175, %v1174
        %v1177 = vmul.f32 %v1171, %v1040
        %v1178 = vadd.f32 %v1176, %v1177
        %s1179 = scalar_lea.vmem %s538, 16 [#allocation12]
        %1180 = vst [vmem:[%s1179] sm:$0xff] %v1178
        %v1181 = vld [vmem:[#allocation3 + $0x48] sm:$0xff]
        %v1182 = vld [vmem:[#allocation3 + $0x50] sm:$0xff]
        %v1183 = vld [vmem:[#allocation3 + $0x58] sm:$0xff]
        %s1184 = scalar_lea.vmem %s487, 24 [#allocation5]
        %v1185 = vld [vmem:[%s1184] sm:$0xff]
        %v1186 = vld [vmem:[#allocation11] sm:$0xff]
        %v1187 = vld [vmem:[#allocation11 + $0x8] sm:$0xff]
        %v1188 = vld [vmem:[#allocation11 + $0x10] sm:$0xff]
        %v1189 = vld [vmem:[#allocation11 + $0x18] sm:$0xff]
        %v1190 = vld [vmem:[#allocation11 + $0x20] sm:$0xff]
        %v1191 = vld [vmem:[#allocation11 + $0x28] sm:$0xff]
        %v1192 = vld [vmem:[#allocation11 + $0x30] sm:$0xff]
        %v1193 = vld [vmem:[#allocation11 + $0x38] sm:$0xff]
        %v1194 = vld [vmem:[#allocation11 + $0x40] sm:$0xff]
        %v1195 = vld [vmem:[#allocation11 + $0x48] sm:$0xff]
        %v1196 = vld [vmem:[#allocation11 + $0x50] sm:$0xff]
        %v1197 = vld [vmem:[#allocation11 + $0x58] sm:$0xff]
        %v1198 = vld [vmem:[#allocation11 + $0x60] sm:$0xff]
        %v1199 = vld [vmem:[#allocation11 + $0x68] sm:$0xff]
        %v1200 = vld [vmem:[#allocation11 + $0x70] sm:$0xff]
        %v1201 = vld [vmem:[#allocation11 + $0x78] sm:$0xff]
        %v1202 = vld [vmem:[#allocation11 + $0x80] sm:$0xff]
        %v1203 = vld [vmem:[#allocation11 + $0x88] sm:$0xff]
        %v1204 = vld [vmem:[#allocation11 + $0x90] sm:$0xff]
        %v1205 = vld [vmem:[#allocation11 + $0x98] sm:$0xff]
        %v1206 = vld [vmem:[#allocation11 + $0xa0] sm:$0xff]
        %v1207 = vld [vmem:[#allocation11 + $0xa8] sm:$0xff]
        %v1208 = vld [vmem:[#allocation11 + $0xb0] sm:$0xff]
        %v1209 = vld [vmem:[#allocation11 + $0xb8] sm:$0xff]
        %v1210 = vld [vmem:[#allocation11 + $0xc0] sm:$0xff]
        %v1211 = vld [vmem:[#allocation11 + $0xc8] sm:$0xff]
        %v1212 = vld [vmem:[#allocation11 + $0xd0] sm:$0xff]
        %v1213 = vld [vmem:[#allocation11 + $0xd8] sm:$0xff]
        %v1214 = vld [vmem:[#allocation11 + $0xe0] sm:$0xff]
        %v1215 = vld [vmem:[#allocation11 + $0xe8] sm:$0xff]
        %v1216 = vld [vmem:[#allocation11 + $0xf0] sm:$0xff]
        %v1217 = vld [vmem:[#allocation11 + $0xf8] sm:$0xff]
        %v1218 = vld [vmem:[#allocation11 + $0x100] sm:$0xff]
        %v1219 = vld [vmem:[#allocation11 + $0x108] sm:$0xff]
        %v1220 = vld [vmem:[#allocation11 + $0x110] sm:$0xff]
        %v1221 = vld [vmem:[#allocation11 + $0x118] sm:$0xff]
        %v1222 = vld [vmem:[#allocation11 + $0x120] sm:$0xff]
        %v1223 = vld [vmem:[#allocation11 + $0x128] sm:$0xff]
        %v1224 = vld [vmem:[#allocation11 + $0x130] sm:$0xff]
        %v1225 = vld [vmem:[#allocation11 + $0x138] sm:$0xff]
        %v1226 = vld [vmem:[#allocation11 + $0x140] sm:$0xff]
        %v1227 = vld [vmem:[#allocation11 + $0x148] sm:$0xff]
        %v1228 = vld [vmem:[#allocation11 + $0x150] sm:$0xff]
        %v1229 = vld [vmem:[#allocation11 + $0x158] sm:$0xff]
        %v1230 = vld [vmem:[#allocation11 + $0x160] sm:$0xff]
        %v1231 = vld [vmem:[#allocation11 + $0x168] sm:$0xff]
        %v1232 = vld [vmem:[#allocation11 + $0x170] sm:$0xff]
        %v1233 = vld [vmem:[#allocation11 + $0x178] sm:$0xff]
        %1234 = vmatpush.msra.mxu0 %v1231
        %1235 = vmatpush.msra.mxu0 %v1228
        %1236 = vmatpush.msra.mxu0 %v1225
        %1237 = vmatpush.msra.mxu0 %v1222
        %1238 = vmatpush.msra.mxu0 %v1219
        %1239 = vmatpush.msra.mxu0 %v1216
        %1240 = vmatpush.msra.mxu0 %v1213
        %1241 = vmatpush.msra.mxu0 %v1210
        %1242 = vmatpush.msra.mxu0 %v1207
        %1243 = vmatpush.msra.mxu0 %v1204
        %1244 = vmatpush.msra.mxu0 %v1201
        %1245 = vmatpush.msra.mxu0 %v1198
        %1246 = vmatpush.msra.mxu0 %v1195
        %1247 = vmatpush.msra.mxu0 %v1192
        %1248 = vmatpush.msra.mxu0 %v1189
        %1249 = vmatpush.msra.mxu0 %v1186
        %1250 = vmatmul.f32.gmra.mxu0 %v1178
        %v1251 = vpop.f32.mrf.mxu0
        %v1252 = vadd.f32 %v815, %v1251
        %1253 = vdwg.mxu0
        %1254 = vmatpush.msra.mxu0 %v1232
        %1255 = vmatpush.msra.mxu0 %v1229
        %1256 = vmatpush.msra.mxu0 %v1226
        %1257 = vmatpush.msra.mxu0 %v1223
        %1258 = vmatpush.msra.mxu0 %v1220
        %1259 = vmatpush.msra.mxu0 %v1217
        %1260 = vmatpush.msra.mxu0 %v1214
        %1261 = vmatpush.msra.mxu0 %v1211
        %1262 = vmatpush.msra.mxu0 %v1208
        %1263 = vmatpush.msra.mxu0 %v1205
        %1264 = vmatpush.msra.mxu0 %v1202
        %1265 = vmatpush.msra.mxu0 %v1199
        %1266 = vmatpush.msra.mxu0 %v1196
        %1267 = vmatpush.msra.mxu0 %v1193
        %1268 = vmatpush.msra.mxu0 %v1190
        %1269 = vmatpush.msra.mxu0 %v1187
        %1270 = vmatmul.f32.gmra.mxu0 %v1178
        %v1271 = vpop.f32.mrf.mxu0
        %v1272 = vadd.f32 %v816, %v1271
        %1273 = vdwg.mxu0
        %1274 = vmatpush.msra.mxu0 %v1233
        %1275 = vmatpush.msra.mxu0 %v1230
        %1276 = vmatpush.msra.mxu0 %v1227
        %1277 = vmatpush.msra.mxu0 %v1224
        %1278 = vmatpush.msra.mxu0 %v1221
        %1279 = vmatpush.msra.mxu0 %v1218
        %1280 = vmatpush.msra.mxu0 %v1215
        %1281 = vmatpush.msra.mxu0 %v1212
        %1282 = vmatpush.msra.mxu0 %v1209
        %1283 = vmatpush.msra.mxu0 %v1206
        %1284 = vmatpush.msra.mxu0 %v1203
        %1285 = vmatpush.msra.mxu0 %v1200
        %1286 = vmatpush.msra.mxu0 %v1197
        %1287 = vmatpush.msra.mxu0 %v1194
        %1288 = vmatpush.msra.mxu0 %v1191
        %1289 = vmatpush.msra.mxu0 %v1188
        %1290 = vmatmul.f32.gmra.mxu0 %v1178
        %v1291 = vpop.f32.mrf.mxu0
        %v1292 = vadd.f32 %v817, %v1291
        %1293 = vdwg.mxu0
        %v1294 = vadd.f32 %v1181, %v1252
        %v1295 = vadd.f32 %v1182, %v1272
        %v1296 = vmul.f32 %v1294, 0.5
        %v1297 = vmul.f32 %v1295, 0.5
        %v1298 = vtanh.pop %v1296
        %v1299 = vtanh.pop %v1297
        %v1300 = vmul.f32 %v1298, 0.5
        %v1301 = vmul.f32 %v1299, 0.5
        %v1302 = vadd.f32 %v1300, 0.5
        %v1303 = vadd.f32 %v1301, 0.5
        %1305 = vset.pattern.permute.xlu0 0
        %1306 = vperm.xlu0 %1305, %v1185
        %v1307 = vpop.permute.xlu0 %1306
        %v1309 = vmul.f32 %v1307, %v1303
        %v1310 = vmul.f32 %v1302, %v1292
        %v1311 = vadd.f32 %v1183, %v1310
        %v1312 = vtanh.pop %v1311
        %v1313 = vsub.f32 1.0, %v1309
        %v1314 = vmul.f32 %v1313, %v1312
        %v1315 = vmul.f32 %v1309, %v1178
        %v1316 = vadd.f32 %v1314, %v1315
        %s1317 = scalar_lea.vmem %s538, 24 [#allocation12]
        %1318 = vst [vmem:[%s1317] sm:$0xff] %v1316
        %v1319 = vld [vmem:[#allocation3 + $0x60] sm:$0xff]
        %v1320 = vld [vmem:[#allocation3 + $0x68] sm:$0xff]
        %v1321 = vld [vmem:[#allocation3 + $0x70] sm:$0xff]
        %s1322 = scalar_lea.vmem %s487, 32 [#allocation5]
        %v1323 = vld [vmem:[%s1322] sm:$0xff]
        %v1324 = vld [vmem:[#allocation11] sm:$0xff]
        %v1325 = vld [vmem:[#allocation11 + $0x8] sm:$0xff]
        %v1326 = vld [vmem:[#allocation11 + $0x10] sm:$0xff]
        %v1327 = vld [vmem:[#allocation11 + $0x18] sm:$0xff]
        %v1328 = vld [vmem:[#allocation11 + $0x20] sm:$0xff]
        %v1329 = vld [vmem:[#allocation11 + $0x28] sm:$0xff]
        %v1330 = vld [vmem:[#allocation11 + $0x30] sm:$0xff]
        %v1331 = vld [vmem:[#allocation11 + $0x38] sm:$0xff]
        %v1332 = vld [vmem:[#allocation11 + $0x40] sm:$0xff]
        %v1333 = vld [vmem:[#allocation11 + $0x48] sm:$0xff]
        %v1334 = vld [vmem:[#allocation11 + $0x50] sm:$0xff]
        %v1335 = vld [vmem:[#allocation11 + $0x58] sm:$0xff]
        %v1336 = vld [vmem:[#allocation11 + $0x60] sm:$0xff]
        %v1337 = vld [vmem:[#allocation11 + $0x68] sm:$0xff]
        %v1338 = vld [vmem:[#allocation11 + $0x70] sm:$0xff]
        %v1339 = vld [vmem:[#allocation11 + $0x78] sm:$0xff]
        %v1340 = vld [vmem:[#allocation11 + $0x80] sm:$0xff]
        %v1341 = vld [vmem:[#allocation11 + $0x88] sm:$0xff]
        %v1342 = vld [vmem:[#allocation11 + $0x90] sm:$0xff]
        %v1343 = vld [vmem:[#allocation11 + $0x98] sm:$0xff]
        %v1344 = vld [vmem:[#allocation11 + $0xa0] sm:$0xff]
        %v1345 = vld [vmem:[#allocation11 + $0xa8] sm:$0xff]
        %v1346 = vld [vmem:[#allocation11 + $0xb0] sm:$0xff]
        %v1347 = vld [vmem:[#allocation11 + $0xb8] sm:$0xff]
        %v1348 = vld [vmem:[#allocation11 + $0xc0] sm:$0xff]
        %v1349 = vld [vmem:[#allocation11 + $0xc8] sm:$0xff]
        %v1350 = vld [vmem:[#allocation11 + $0xd0] sm:$0xff]
        %v1351 = vld [vmem:[#allocation11 + $0xd8] sm:$0xff]
        %v1352 = vld [vmem:[#allocation11 + $0xe0] sm:$0xff]
        %v1353 = vld [vmem:[#allocation11 + $0xe8] sm:$0xff]
        %v1354 = vld [vmem:[#allocation11 + $0xf0] sm:$0xff]
        %v1355 = vld [vmem:[#allocation11 + $0xf8] sm:$0xff]
        %v1356 = vld [vmem:[#allocation11 + $0x100] sm:$0xff]
        %v1357 = vld [vmem:[#allocation11 + $0x108] sm:$0xff]
        %v1358 = vld [vmem:[#allocation11 + $0x110] sm:$0xff]
        %v1359 = vld [vmem:[#allocation11 + $0x118] sm:$0xff]
        %v1360 = vld [vmem:[#allocation11 + $0x120] sm:$0xff]
        %v1361 = vld [vmem:[#allocation11 + $0x128] sm:$0xff]
        %v1362 = vld [vmem:[#allocation11 + $0x130] sm:$0xff]
        %v1363 = vld [vmem:[#allocation11 + $0x138] sm:$0xff]
        %v1364 = vld [vmem:[#allocation11 + $0x140] sm:$0xff]
        %v1365 = vld [vmem:[#allocation11 + $0x148] sm:$0xff]
        %v1366 = vld [vmem:[#allocation11 + $0x150] sm:$0xff]
        %v1367 = vld [vmem:[#allocation11 + $0x158] sm:$0xff]
        %v1368 = vld [vmem:[#allocation11 + $0x160] sm:$0xff]
        %v1369 = vld [vmem:[#allocation11 + $0x168] sm:$0xff]
        %v1370 = vld [vmem:[#allocation11 + $0x170] sm:$0xff]
        %v1371 = vld [vmem:[#allocation11 + $0x178] sm:$0xff]
        %1372 = vmatpush.msra.mxu0 %v1369
        %1373 = vmatpush.msra.mxu0 %v1366
        %1374 = vmatpush.msra.mxu0 %v1363
        %1375 = vmatpush.msra.mxu0 %v1360
        %1376 = vmatpush.msra.mxu0 %v1357
        %1377 = vmatpush.msra.mxu0 %v1354
        %1378 = vmatpush.msra.mxu0 %v1351
        %1379 = vmatpush.msra.mxu0 %v1348
        %1380 = vmatpush.msra.mxu0 %v1345
        %1381 = vmatpush.msra.mxu0 %v1342
        %1382 = vmatpush.msra.mxu0 %v1339
        %1383 = vmatpush.msra.mxu0 %v1336
        %1384 = vmatpush.msra.mxu0 %v1333
        %1385 = vmatpush.msra.mxu0 %v1330
        %1386 = vmatpush.msra.mxu0 %v1327
        %1387 = vmatpush.msra.mxu0 %v1324
        %1388 = vmatmul.f32.gmra.mxu0 %v1316
        %v1389 = vpop.f32.mrf.mxu0
        %v1390 = vadd.f32 %v815, %v1389
        %1391 = vdwg.mxu0
        %1392 = vmatpush.msra.mxu0 %v1370
        %1393 = vmatpush.msra.mxu0 %v1367
        %1394 = vmatpush.msra.mxu0 %v1364
        %1395 = vmatpush.msra.mxu0 %v1361
        %1396 = vmatpush.msra.mxu0 %v1358
        %1397 = vmatpush.msra.mxu0 %v1355
        %1398 = vmatpush.msra.mxu0 %v1352
        %1399 = vmatpush.msra.mxu0 %v1349
        %1400 = vmatpush.msra.mxu0 %v1346
        %1401 = vmatpush.msra.mxu0 %v1343
        %1402 = vmatpush.msra.mxu0 %v1340
        %1403 = vmatpush.msra.mxu0 %v1337
        %1404 = vmatpush.msra.mxu0 %v1334
        %1405 = vmatpush.msra.mxu0 %v1331
        %1406 = vmatpush.msra.mxu0 %v1328
        %1407 = vmatpush.msra.mxu0 %v1325
        %1408 = vmatmul.f32.gmra.mxu0 %v1316
        %v1409 = vpop.f32.mrf.mxu0
        %v1410 = vadd.f32 %v816, %v1409
        %1411 = vdwg.mxu0
        %1412 = vmatpush.msra.mxu0 %v1371
        %1413 = vmatpush.msra.mxu0 %v1368
        %1414 = vmatpush.msra.mxu0 %v1365
        %1415 = vmatpush.msra.mxu0 %v1362
        %1416 = vmatpush.msra.mxu0 %v1359
        %1417 = vmatpush.msra.mxu0 %v1356
        %1418 = vmatpush.msra.mxu0 %v1353
        %1419 = vmatpush.msra.mxu0 %v1350
        %1420 = vmatpush.msra.mxu0 %v1347
        %1421 = vmatpush.msra.mxu0 %v1344
        %1422 = vmatpush.msra.mxu0 %v1341
        %1423 = vmatpush.msra.mxu0 %v1338
        %1424 = vmatpush.msra.mxu0 %v1335
        %1425 = vmatpush.msra.mxu0 %v1332
        %1426 = vmatpush.msra.mxu0 %v1329
        %1427 = vmatpush.msra.mxu0 %v1326
        %1428 = vmatmul.f32.gmra.mxu0 %v1316
        %v1429 = vpop.f32.mrf.mxu0
        %v1430 = vadd.f32 %v817, %v1429
        %1431 = vdwg.mxu0
        %v1432 = vadd.f32 %v1319, %v1390
        %v1433 = vadd.f32 %v1320, %v1410
        %v1434 = vmul.f32 %v1432, 0.5
        %v1435 = vmul.f32 %v1433, 0.5
        %v1436 = vtanh.pop %v1434
        %v1437 = vtanh.pop %v1435
        %v1438 = vmul.f32 %v1436, 0.5
        %v1439 = vmul.f32 %v1437, 0.5
        %v1440 = vadd.f32 %v1438, 0.5
        %v1441 = vadd.f32 %v1439, 0.5
        %1443 = vset.pattern.permute.xlu0 0
        %1444 = vperm.xlu0 %1443, %v1323
        %v1445 = vpop.permute.xlu0 %1444
        %v1447 = vmul.f32 %v1445, %v1441
        %v1448 = vmul.f32 %v1440, %v1430
        %v1449 = vadd.f32 %v1321, %v1448
        %v1450 = vtanh.pop %v1449
        %v1451 = vsub.f32 1.0, %v1447
        %v1452 = vmul.f32 %v1451, %v1450
        %v1453 = vmul.f32 %v1447, %v1316
        %v1454 = vadd.f32 %v1452, %v1453
        %s1455 = scalar_select %p760, 1, 0
        %v1456 = vstv %s1455
        %vm1457 = vcmp.eq.s32.totalorder %v1456, 1
        %v1458 = vsel %vm1457, %v1316, %v1454
        %s1459 = scalar_lea.vmem %s538, 32 [#allocation12]
        %1460 = vst [vmem:[%s1459] sm:$0xff] %v1458
        %v1461 = vld [vmem:[#allocation3 + $0x78] sm:$0xff]
        %v1462 = vld [vmem:[#allocation3 + $0x80] sm:$0xff]
        %v1463 = vld [vmem:[#allocation3 + $0x88] sm:$0xff]
        %s1464 = scalar_lea.vmem %s487, 40 [#allocation5]
        %v1465 = vld [vmem:[%s1464] sm:$0xff]
        %v1466 = vld [vmem:[#allocation11] sm:$0xff]
        %v1467 = vld [vmem:[#allocation11 + $0x8] sm:$0xff]
        %v1468 = vld [vmem:[#allocation11 + $0x10] sm:$0xff]
        %v1469 = vld [vmem:[#allocation11 + $0x18] sm:$0xff]
        %v1470 = vld [vmem:[#allocation11 + $0x20] sm:$0xff]
        %v1471 = vld [vmem:[#allocation11 + $0x28] sm:$0xff]
        %v1472 = vld [vmem:[#allocation11 + $0x30] sm:$0xff]
        %v1473 = vld [vmem:[#allocation11 + $0x38] sm:$0xff]
        %v1474 = vld [vmem:[#allocation11 + $0x40] sm:$0xff]
        %v1475 = vld [vmem:[#allocation11 + $0x48] sm:$0xff]
        %v1476 = vld [vmem:[#allocation11 + $0x50] sm:$0xff]
        %v1477 = vld [vmem:[#allocation11 + $0x58] sm:$0xff]
        %v1478 = vld [vmem:[#allocation11 + $0x60] sm:$0xff]
        %v1479 = vld [vmem:[#allocation11 + $0x68] sm:$0xff]
        %v1480 = vld [vmem:[#allocation11 + $0x70] sm:$0xff]
        %v1481 = vld [vmem:[#allocation11 + $0x78] sm:$0xff]
        %v1482 = vld [vmem:[#allocation11 + $0x80] sm:$0xff]
        %v1483 = vld [vmem:[#allocation11 + $0x88] sm:$0xff]
        %v1484 = vld [vmem:[#allocation11 + $0x90] sm:$0xff]
        %v1485 = vld [vmem:[#allocation11 + $0x98] sm:$0xff]
        %v1486 = vld [vmem:[#allocation11 + $0xa0] sm:$0xff]
        %v1487 = vld [vmem:[#allocation11 + $0xa8] sm:$0xff]
        %v1488 = vld [vmem:[#allocation11 + $0xb0] sm:$0xff]
        %v1489 = vld [vmem:[#allocation11 + $0xb8] sm:$0xff]
        %v1490 = vld [vmem:[#allocation11 + $0xc0] sm:$0xff]
        %v1491 = vld [vmem:[#allocation11 + $0xc8] sm:$0xff]
        %v1492 = vld [vmem:[#allocation11 + $0xd0] sm:$0xff]
        %v1493 = vld [vmem:[#allocation11 + $0xd8] sm:$0xff]
        %v1494 = vld [vmem:[#allocation11 + $0xe0] sm:$0xff]
        %v1495 = vld [vmem:[#allocation11 + $0xe8] sm:$0xff]
        %v1496 = vld [vmem:[#allocation11 + $0xf0] sm:$0xff]
        %v1497 = vld [vmem:[#allocation11 + $0xf8] sm:$0xff]
        %v1498 = vld [vmem:[#allocation11 + $0x100] sm:$0xff]
        %v1499 = vld [vmem:[#allocation11 + $0x108] sm:$0xff]
        %v1500 = vld [vmem:[#allocation11 + $0x110] sm:$0xff]
        %v1501 = vld [vmem:[#allocation11 + $0x118] sm:$0xff]
        %v1502 = vld [vmem:[#allocation11 + $0x120] sm:$0xff]
        %v1503 = vld [vmem:[#allocation11 + $0x128] sm:$0xff]
        %v1504 = vld [vmem:[#allocation11 + $0x130] sm:$0xff]
        %v1505 = vld [vmem:[#allocation11 + $0x138] sm:$0xff]
        %v1506 = vld [vmem:[#allocation11 + $0x140] sm:$0xff]
        %v1507 = vld [vmem:[#allocation11 + $0x148] sm:$0xff]
        %v1508 = vld [vmem:[#allocation11 + $0x150] sm:$0xff]
        %v1509 = vld [vmem:[#allocation11 + $0x158] sm:$0xff]
        %v1510 = vld [vmem:[#allocation11 + $0x160] sm:$0xff]
        %v1511 = vld [vmem:[#allocation11 + $0x168] sm:$0xff]
        %v1512 = vld [vmem:[#allocation11 + $0x170] sm:$0xff]
        %v1513 = vld [vmem:[#allocation11 + $0x178] sm:$0xff]
        %1514 = vmatpush.msra.mxu0 %v1511
        %1515 = vmatpush.msra.mxu0 %v1508
        %1516 = vmatpush.msra.mxu0 %v1505
        %1517 = vmatpush.msra.mxu0 %v1502
        %1518 = vmatpush.msra.mxu0 %v1499
        %1519 = vmatpush.msra.mxu0 %v1496
        %1520 = vmatpush.msra.mxu0 %v1493
        %1521 = vmatpush.msra.mxu0 %v1490
        %1522 = vmatpush.msra.mxu0 %v1487
        %1523 = vmatpush.msra.mxu0 %v1484
        %1524 = vmatpush.msra.mxu0 %v1481
        %1525 = vmatpush.msra.mxu0 %v1478
        %1526 = vmatpush.msra.mxu0 %v1475
        %1527 = vmatpush.msra.mxu0 %v1472
        %1528 = vmatpush.msra.mxu0 %v1469
        %1529 = vmatpush.msra.mxu0 %v1466
        %1530 = vmatmul.f32.gmra.mxu0 %v1458
        %v1531 = vpop.f32.mrf.mxu0
        %v1532 = vadd.f32 %v815, %v1531
        %1533 = vdwg.mxu0
        %1534 = vmatpush.msra.mxu0 %v1512
        %1535 = vmatpush.msra.mxu0 %v1509
        %1536 = vmatpush.msra.mxu0 %v1506
        %1537 = vmatpush.msra.mxu0 %v1503
        %1538 = vmatpush.msra.mxu0 %v1500
        %1539 = vmatpush.msra.mxu0 %v1497
        %1540 = vmatpush.msra.mxu0 %v1494
        %1541 = vmatpush.msra.mxu0 %v1491
        %1542 = vmatpush.msra.mxu0 %v1488
        %1543 = vmatpush.msra.mxu0 %v1485
        %1544 = vmatpush.msra.mxu0 %v1482
        %1545 = vmatpush.msra.mxu0 %v1479
        %1546 = vmatpush.msra.mxu0 %v1476
        %1547 = vmatpush.msra.mxu0 %v1473
        %1548 = vmatpush.msra.mxu0 %v1470
        %1549 = vmatpush.msra.mxu0 %v1467
        %1550 = vmatmul.f32.gmra.mxu0 %v1458
        %v1551 = vpop.f32.mrf.mxu0
        %v1552 = vadd.f32 %v816, %v1551
        %1553 = vdwg.mxu0
        %1554 = vmatpush.msra.mxu0 %v1513
        %1555 = vmatpush.msra.mxu0 %v1510
        %1556 = vmatpush.msra.mxu0 %v1507
        %1557 = vmatpush.msra.mxu0 %v1504
        %1558 = vmatpush.msra.mxu0 %v1501
        %1559 = vmatpush.msra.mxu0 %v1498
        %1560 = vmatpush.msra.mxu0 %v1495
        %1561 = vmatpush.msra.mxu0 %v1492
        %1562 = vmatpush.msra.mxu0 %v1489
        %1563 = vmatpush.msra.mxu0 %v1486
        %1564 = vmatpush.msra.mxu0 %v1483
        %1565 = vmatpush.msra.mxu0 %v1480
        %1566 = vmatpush.msra.mxu0 %v1477
        %1567 = vmatpush.msra.mxu0 %v1474
        %1568 = vmatpush.msra.mxu0 %v1471
        %1569 = vmatpush.msra.mxu0 %v1468
        %1570 = vmatmul.f32.gmra.mxu0 %v1458
        %v1571 = vpop.f32.mrf.mxu0
        %v1572 = vadd.f32 %v817, %v1571
        %1573 = vdwg.mxu0
        %v1574 = vadd.f32 %v1461, %v1532
        %v1575 = vadd.f32 %v1462, %v1552
        %v1576 = vmul.f32 %v1574, 0.5
        %v1577 = vmul.f32 %v1575, 0.5
        %v1578 = vtanh.pop %v1576
        %v1579 = vtanh.pop %v1577
        %v1580 = vmul.f32 %v1578, 0.5
        %v1581 = vmul.f32 %v1579, 0.5
        %v1582 = vadd.f32 %v1580, 0.5
        %v1583 = vadd.f32 %v1581, 0.5
        %1585 = vset.pattern.permute.xlu0 0
        %1586 = vperm.xlu0 %1585, %v1465
        %v1587 = vpop.permute.xlu0 %1586
        %v1589 = vmul.f32 %v1587, %v1583
        %v1590 = vmul.f32 %v1582, %v1572
        %v1591 = vadd.f32 %v1463, %v1590
        %v1592 = vtanh.pop %v1591
        %v1593 = vsub.f32 1.0, %v1589
        %v1594 = vmul.f32 %v1593, %v1592
        %v1595 = vmul.f32 %v1589, %v1458
        %v1596 = vadd.f32 %v1594, %v1595
        %v1597 = vsel %vm1457, %v1316, %v1596
        %s1598 = scalar_lea.vmem %s538, 40 [#allocation12]
        %1599 = vst [vmem:[%s1598] sm:$0xff] %v1597
        %v1600 = vld [vmem:[#allocation3 + $0x90] sm:$0xff]
        %v1601 = vld [vmem:[#allocation3 + $0x98] sm:$0xff]
        %v1602 = vld [vmem:[#allocation3 + $0xa0] sm:$0xff]
        %s1603 = scalar_lea.vmem %s487, 48 [#allocation5]
        %v1604 = vld [vmem:[%s1603] sm:$0xff]
        %v1605 = vld [vmem:[#allocation11] sm:$0xff]
        %v1606 = vld [vmem:[#allocation11 + $0x8] sm:$0xff]
        %v1607 = vld [vmem:[#allocation11 + $0x10] sm:$0xff]
        %v1608 = vld [vmem:[#allocation11 + $0x18] sm:$0xff]
        %v1609 = vld [vmem:[#allocation11 + $0x20] sm:$0xff]
        %v1610 = vld [vmem:[#allocation11 + $0x28] sm:$0xff]
        %v1611 = vld [vmem:[#allocation11 + $0x30] sm:$0xff]
        %v1612 = vld [vmem:[#allocation11 + $0x38] sm:$0xff]
        %v1613 = vld [vmem:[#allocation11 + $0x40] sm:$0xff]
        %v1614 = vld [vmem:[#allocation11 + $0x48] sm:$0xff]
        %v1615 = vld [vmem:[#allocation11 + $0x50] sm:$0xff]
        %v1616 = vld [vmem:[#allocation11 + $0x58] sm:$0xff]
        %v1617 = vld [vmem:[#allocation11 + $0x60] sm:$0xff]
        %v1618 = vld [vmem:[#allocation11 + $0x68] sm:$0xff]
        %v1619 = vld [vmem:[#allocation11 + $0x70] sm:$0xff]
        %v1620 = vld [vmem:[#allocation11 + $0x78] sm:$0xff]
        %v1621 = vld [vmem:[#allocation11 + $0x80] sm:$0xff]
        %v1622 = vld [vmem:[#allocation11 + $0x88] sm:$0xff]
        %v1623 = vld [vmem:[#allocation11 + $0x90] sm:$0xff]
        %v1624 = vld [vmem:[#allocation11 + $0x98] sm:$0xff]
        %v1625 = vld [vmem:[#allocation11 + $0xa0] sm:$0xff]
        %v1626 = vld [vmem:[#allocation11 + $0xa8] sm:$0xff]
        %v1627 = vld [vmem:[#allocation11 + $0xb0] sm:$0xff]
        %v1628 = vld [vmem:[#allocation11 + $0xb8] sm:$0xff]
        %v1629 = vld [vmem:[#allocation11 + $0xc0] sm:$0xff]
        %v1630 = vld [vmem:[#allocation11 + $0xc8] sm:$0xff]
        %v1631 = vld [vmem:[#allocation11 + $0xd0] sm:$0xff]
        %v1632 = vld [vmem:[#allocation11 + $0xd8] sm:$0xff]
        %v1633 = vld [vmem:[#allocation11 + $0xe0] sm:$0xff]
        %v1634 = vld [vmem:[#allocation11 + $0xe8] sm:$0xff]
        %v1635 = vld [vmem:[#allocation11 + $0xf0] sm:$0xff]
        %v1636 = vld [vmem:[#allocation11 + $0xf8] sm:$0xff]
        %v1637 = vld [vmem:[#allocation11 + $0x100] sm:$0xff]
        %v1638 = vld [vmem:[#allocation11 + $0x108] sm:$0xff]
        %v1639 = vld [vmem:[#allocation11 + $0x110] sm:$0xff]
        %v1640 = vld [vmem:[#allocation11 + $0x118] sm:$0xff]
        %v1641 = vld [vmem:[#allocation11 + $0x120] sm:$0xff]
        %v1642 = vld [vmem:[#allocation11 + $0x128] sm:$0xff]
        %v1643 = vld [vmem:[#allocation11 + $0x130] sm:$0xff]
        %v1644 = vld [vmem:[#allocation11 + $0x138] sm:$0xff]
        %v1645 = vld [vmem:[#allocation11 + $0x140] sm:$0xff]
        %v1646 = vld [vmem:[#allocation11 + $0x148] sm:$0xff]
        %v1647 = vld [vmem:[#allocation11 + $0x150] sm:$0xff]
        %v1648 = vld [vmem:[#allocation11 + $0x158] sm:$0xff]
        %v1649 = vld [vmem:[#allocation11 + $0x160] sm:$0xff]
        %v1650 = vld [vmem:[#allocation11 + $0x168] sm:$0xff]
        %v1651 = vld [vmem:[#allocation11 + $0x170] sm:$0xff]
        %v1652 = vld [vmem:[#allocation11 + $0x178] sm:$0xff]
        %1653 = vmatpush.msra.mxu0 %v1650
        %1654 = vmatpush.msra.mxu0 %v1647
        %1655 = vmatpush.msra.mxu0 %v1644
        %1656 = vmatpush.msra.mxu0 %v1641
        %1657 = vmatpush.msra.mxu0 %v1638
        %1658 = vmatpush.msra.mxu0 %v1635
        %1659 = vmatpush.msra.mxu0 %v1632
        %1660 = vmatpush.msra.mxu0 %v1629
        %1661 = vmatpush.msra.mxu0 %v1626
        %1662 = vmatpush.msra.mxu0 %v1623
        %1663 = vmatpush.msra.mxu0 %v1620
        %1664 = vmatpush.msra.mxu0 %v1617
        %1665 = vmatpush.msra.mxu0 %v1614
        %1666 = vmatpush.msra.mxu0 %v1611
        %1667 = vmatpush.msra.mxu0 %v1608
        %1668 = vmatpush.msra.mxu0 %v1605
        %1669 = vmatmul.f32.gmra.mxu0 %v1597
        %v1670 = vpop.f32.mrf.mxu0
        %v1671 = vadd.f32 %v815, %v1670
        %1672 = vdwg.mxu0
        %1673 = vmatpush.msra.mxu0 %v1651
        %1674 = vmatpush.msra.mxu0 %v1648
        %1675 = vmatpush.msra.mxu0 %v1645
        %1676 = vmatpush.msra.mxu0 %v1642
        %1677 = vmatpush.msra.mxu0 %v1639
        %1678 = vmatpush.msra.mxu0 %v1636
        %1679 = vmatpush.msra.mxu0 %v1633
        %1680 = vmatpush.msra.mxu0 %v1630
        %1681 = vmatpush.msra.mxu0 %v1627
        %1682 = vmatpush.msra.mxu0 %v1624
        %1683 = vmatpush.msra.mxu0 %v1621
        %1684 = vmatpush.msra.mxu0 %v1618
        %1685 = vmatpush.msra.mxu0 %v1615
        %1686 = vmatpush.msra.mxu0 %v1612
        %1687 = vmatpush.msra.mxu0 %v1609
        %1688 = vmatpush.msra.mxu0 %v1606
        %1689 = vmatmul.f32.gmra.mxu0 %v1597
        %v1690 = vpop.f32.mrf.mxu0
        %v1691 = vadd.f32 %v816, %v1690
        %1692 = vdwg.mxu0
        %1693 = vmatpush.msra.mxu0 %v1652
        %1694 = vmatpush.msra.mxu0 %v1649
        %1695 = vmatpush.msra.mxu0 %v1646
        %1696 = vmatpush.msra.mxu0 %v1643
        %1697 = vmatpush.msra.mxu0 %v1640
        %1698 = vmatpush.msra.mxu0 %v1637
        %1699 = vmatpush.msra.mxu0 %v1634
        %1700 = vmatpush.msra.mxu0 %v1631
        %1701 = vmatpush.msra.mxu0 %v1628
        %1702 = vmatpush.msra.mxu0 %v1625
        %1703 = vmatpush.msra.mxu0 %v1622
        %1704 = vmatpush.msra.mxu0 %v1619
        %1705 = vmatpush.msra.mxu0 %v1616
        %1706 = vmatpush.msra.mxu0 %v1613
        %1707 = vmatpush.msra.mxu0 %v1610
        %1708 = vmatpush.msra.mxu0 %v1607
        %1709 = vmatmul.f32.gmra.mxu0 %v1597
        %v1710 = vpop.f32.mrf.mxu0
        %v1711 = vadd.f32 %v817, %v1710
        %1712 = vdwg.mxu0
        %v1713 = vadd.f32 %v1600, %v1671
        %v1714 = vadd.f32 %v1601, %v1691
        %v1715 = vmul.f32 %v1713, 0.5
        %v1716 = vmul.f32 %v1714, 0.5
        %v1717 = vtanh.pop %v1715
        %v1718 = vtanh.pop %v1716
        %v1719 = vmul.f32 %v1717, 0.5
        %v1720 = vmul.f32 %v1718, 0.5
        %v1721 = vadd.f32 %v1719, 0.5
        %v1722 = vadd.f32 %v1720, 0.5
        %1724 = vset.pattern.permute.xlu0 0
        %1725 = vperm.xlu0 %1724, %v1604
        %v1726 = vpop.permute.xlu0 %1725
        %v1728 = vmul.f32 %v1726, %v1722
        %v1729 = vmul.f32 %v1721, %v1711
        %v1730 = vadd.f32 %v1602, %v1729
        %v1731 = vtanh.pop %v1730
        %v1732 = vsub.f32 1.0, %v1728
        %v1733 = vmul.f32 %v1732, %v1731
        %v1734 = vmul.f32 %v1728, %v1597
        %v1735 = vadd.f32 %v1733, %v1734
        %v1736 = vsel %vm1457, %v1316, %v1735
        %s1737 = scalar_lea.vmem %s538, 48 [#allocation12]
        %1738 = vst [vmem:[%s1737] sm:$0xff] %v1736
        %v1739 = vld [vmem:[#allocation3 + $0xa8] sm:$0xff]
        %v1740 = vld [vmem:[#allocation3 + $0xb0] sm:$0xff]
        %v1741 = vld [vmem:[#allocation3 + $0xb8] sm:$0xff]
        %s1742 = scalar_lea.vmem %s487, 56 [#allocation5]
        %v1743 = vld [vmem:[%s1742] sm:$0xff]
        %v1744 = vld [vmem:[#allocation11] sm:$0xff]
        %v1745 = vld [vmem:[#allocation11 + $0x8] sm:$0xff]
        %v1746 = vld [vmem:[#allocation11 + $0x10] sm:$0xff]
        %v1747 = vld [vmem:[#allocation11 + $0x18] sm:$0xff]
        %v1748 = vld [vmem:[#allocation11 + $0x20] sm:$0xff]
        %v1749 = vld [vmem:[#allocation11 + $0x28] sm:$0xff]
        %v1750 = vld [vmem:[#allocation11 + $0x30] sm:$0xff]
        %v1751 = vld [vmem:[#allocation11 + $0x38] sm:$0xff]
        %v1752 = vld [vmem:[#allocation11 + $0x40] sm:$0xff]
        %v1753 = vld [vmem:[#allocation11 + $0x48] sm:$0xff]
        %v1754 = vld [vmem:[#allocation11 + $0x50] sm:$0xff]
        %v1755 = vld [vmem:[#allocation11 + $0x58] sm:$0xff]
        %v1756 = vld [vmem:[#allocation11 + $0x60] sm:$0xff]
        %v1757 = vld [vmem:[#allocation11 + $0x68] sm:$0xff]
        %v1758 = vld [vmem:[#allocation11 + $0x70] sm:$0xff]
        %v1759 = vld [vmem:[#allocation11 + $0x78] sm:$0xff]
        %v1760 = vld [vmem:[#allocation11 + $0x80] sm:$0xff]
        %v1761 = vld [vmem:[#allocation11 + $0x88] sm:$0xff]
        %v1762 = vld [vmem:[#allocation11 + $0x90] sm:$0xff]
        %v1763 = vld [vmem:[#allocation11 + $0x98] sm:$0xff]
        %v1764 = vld [vmem:[#allocation11 + $0xa0] sm:$0xff]
        %v1765 = vld [vmem:[#allocation11 + $0xa8] sm:$0xff]
        %v1766 = vld [vmem:[#allocation11 + $0xb0] sm:$0xff]
        %v1767 = vld [vmem:[#allocation11 + $0xb8] sm:$0xff]
        %v1768 = vld [vmem:[#allocation11 + $0xc0] sm:$0xff]
        %v1769 = vld [vmem:[#allocation11 + $0xc8] sm:$0xff]
        %v1770 = vld [vmem:[#allocation11 + $0xd0] sm:$0xff]
        %v1771 = vld [vmem:[#allocation11 + $0xd8] sm:$0xff]
        %v1772 = vld [vmem:[#allocation11 + $0xe0] sm:$0xff]
        %v1773 = vld [vmem:[#allocation11 + $0xe8] sm:$0xff]
        %v1774 = vld [vmem:[#allocation11 + $0xf0] sm:$0xff]
        %v1775 = vld [vmem:[#allocation11 + $0xf8] sm:$0xff]
        %v1776 = vld [vmem:[#allocation11 + $0x100] sm:$0xff]
        %v1777 = vld [vmem:[#allocation11 + $0x108] sm:$0xff]
        %v1778 = vld [vmem:[#allocation11 + $0x110] sm:$0xff]
        %v1779 = vld [vmem:[#allocation11 + $0x118] sm:$0xff]
        %v1780 = vld [vmem:[#allocation11 + $0x120] sm:$0xff]
        %v1781 = vld [vmem:[#allocation11 + $0x128] sm:$0xff]
        %v1782 = vld [vmem:[#allocation11 + $0x130] sm:$0xff]
        %v1783 = vld [vmem:[#allocation11 + $0x138] sm:$0xff]
        %v1784 = vld [vmem:[#allocation11 + $0x140] sm:$0xff]
        %v1785 = vld [vmem:[#allocation11 + $0x148] sm:$0xff]
        %v1786 = vld [vmem:[#allocation11 + $0x150] sm:$0xff]
        %v1787 = vld [vmem:[#allocation11 + $0x158] sm:$0xff]
        %v1788 = vld [vmem:[#allocation11 + $0x160] sm:$0xff]
        %v1789 = vld [vmem:[#allocation11 + $0x168] sm:$0xff]
        %v1790 = vld [vmem:[#allocation11 + $0x170] sm:$0xff]
        %v1791 = vld [vmem:[#allocation11 + $0x178] sm:$0xff]
        %1792 = vmatpush.msra.mxu0 %v1789
        %1793 = vmatpush.msra.mxu0 %v1786
        %1794 = vmatpush.msra.mxu0 %v1783
        %1795 = vmatpush.msra.mxu0 %v1780
        %1796 = vmatpush.msra.mxu0 %v1777
        %1797 = vmatpush.msra.mxu0 %v1774
        %1798 = vmatpush.msra.mxu0 %v1771
        %1799 = vmatpush.msra.mxu0 %v1768
        %1800 = vmatpush.msra.mxu0 %v1765
        %1801 = vmatpush.msra.mxu0 %v1762
        %1802 = vmatpush.msra.mxu0 %v1759
        %1803 = vmatpush.msra.mxu0 %v1756
        %1804 = vmatpush.msra.mxu0 %v1753
        %1805 = vmatpush.msra.mxu0 %v1750
        %1806 = vmatpush.msra.mxu0 %v1747
        %1807 = vmatpush.msra.mxu0 %v1744
        %1808 = vmatmul.f32.gmra.mxu0 %v1736
        %v1809 = vpop.f32.mrf.mxu0
        %v1810 = vadd.f32 %v815, %v1809
        %1811 = vdwg.mxu0
        %1812 = vmatpush.msra.mxu0 %v1790
        %1813 = vmatpush.msra.mxu0 %v1787
        %1814 = vmatpush.msra.mxu0 %v1784
        %1815 = vmatpush.msra.mxu0 %v1781
        %1816 = vmatpush.msra.mxu0 %v1778
        %1817 = vmatpush.msra.mxu0 %v1775
        %1818 = vmatpush.msra.mxu0 %v1772
        %1819 = vmatpush.msra.mxu0 %v1769
        %1820 = vmatpush.msra.mxu0 %v1766
        %1821 = vmatpush.msra.mxu0 %v1763
        %1822 = vmatpush.msra.mxu0 %v1760
        %1823 = vmatpush.msra.mxu0 %v1757
        %1824 = vmatpush.msra.mxu0 %v1754
        %1825 = vmatpush.msra.mxu0 %v1751
        %1826 = vmatpush.msra.mxu0 %v1748
        %1827 = vmatpush.msra.mxu0 %v1745
        %1828 = vmatmul.f32.gmra.mxu0 %v1736
        %v1829 = vpop.f32.mrf.mxu0
        %v1830 = vadd.f32 %v816, %v1829
        %1831 = vdwg.mxu0
        %1832 = vmatpush.msra.mxu0 %v1791
        %1833 = vmatpush.msra.mxu0 %v1788
        %1834 = vmatpush.msra.mxu0 %v1785
        %1835 = vmatpush.msra.mxu0 %v1782
        %1836 = vmatpush.msra.mxu0 %v1779
        %1837 = vmatpush.msra.mxu0 %v1776
        %1838 = vmatpush.msra.mxu0 %v1773
        %1839 = vmatpush.msra.mxu0 %v1770
        %1840 = vmatpush.msra.mxu0 %v1767
        %1841 = vmatpush.msra.mxu0 %v1764
        %1842 = vmatpush.msra.mxu0 %v1761
        %1843 = vmatpush.msra.mxu0 %v1758
        %1844 = vmatpush.msra.mxu0 %v1755
        %1845 = vmatpush.msra.mxu0 %v1752
        %1846 = vmatpush.msra.mxu0 %v1749
        %1847 = vmatpush.msra.mxu0 %v1746
        %1848 = vmatmul.f32.gmra.mxu0 %v1736
        %v1849 = vpop.f32.mrf.mxu0
        %v1850 = vadd.f32 %v817, %v1849
        %1851 = vdwg.mxu0
        %v1852 = vadd.f32 %v1739, %v1810
        %v1853 = vadd.f32 %v1740, %v1830
        %v1854 = vmul.f32 %v1852, 0.5
        %v1855 = vmul.f32 %v1853, 0.5
        %v1856 = vtanh.pop %v1854
        %v1857 = vtanh.pop %v1855
        %v1858 = vmul.f32 %v1856, 0.5
        %v1859 = vmul.f32 %v1857, 0.5
        %v1860 = vadd.f32 %v1858, 0.5
        %v1861 = vadd.f32 %v1859, 0.5
        %1863 = vset.pattern.permute.xlu0 0
        %1864 = vperm.xlu0 %1863, %v1743
        %v1865 = vpop.permute.xlu0 %1864
        %v1867 = vmul.f32 %v1865, %v1861
        %v1868 = vmul.f32 %v1860, %v1850
        %v1869 = vadd.f32 %v1741, %v1868
        %v1870 = vtanh.pop %v1869
        %v1871 = vsub.f32 1.0, %v1867
        %v1872 = vmul.f32 %v1871, %v1870
        %v1873 = vmul.f32 %v1867, %v1736
        %v1874 = vadd.f32 %v1872, %v1873
        %v1875 = vsel %vm1457, %v1316, %v1874
        %s1876 = scalar_lea.vmem %s538, 56 [#allocation12]
        %1877 = vst [vmem:[%s1876] sm:$0xff] %v1875
        %1878 = vst [vmem:[#allocation2] sm:$0xff] %v1875
        // Predicated region
        $region141: #{tpu_custom_call.1} parent=115 // pred_check
          %p1879 = pneg %p760
        $region142: #{tpu_custom_call.1} parent=115 // pred_check_branch
          %1881 = sbr.rel (%p1879) target = $region144
        $region143: #{tpu_custom_call.1} parent=115 // pred_region
          %1882 = vst [vmem:[%s545] sm:$0xff] %v1875
        $region144: #{tpu_custom_call.1} parent=115 // pred_fallthru
          _
        %s1883 = sand.u32 %s216, 1
        %s1884 = scalar_lea.sflag [#allocation8], %s1883
        %s1885 = sand.u32 %s216, 1
        %s1886 = smul.addr %s1885, 64
        %s1887 = scalar_lea.vmem [#allocation12], %s1886
        %s1888 = sand.u32 %s242, 1
        %s1889 = scalar_lea.sflag [#allocation14], %s1888
        %s1890 = sand.u32 %s242, 1
        %s1891 = smul.addr %s1890, 8
        %s1892 = scalar_lea.vmem [#allocation13], %s1891
        // Predicated region
        $region145: #{tpu_custom_call.1} parent=115 // pred_check
          %p1893 = pneg %p226
        $region146: #{tpu_custom_call.1} parent=115 // pred_check_branch
          %1895 = sbr.rel (%p1893) target = $region148
        $region147: #{tpu_custom_call.1} parent=115 // pred_region
          %s1896 = smul.u32 8, %s33
          %1898 = vsyncadd %s1884, 0
          %s1899 = smul.addr %s1896, 2
          %s1900 = sadd.s32 %s32, %s1899
          %s1901 = smul.addr %s1900, 8
          %s1902 = scalar_lea.hbm %s7, %s1901
          %s1903 = sshll.u32 %s1887, 4
          %s1904 = int_to_ptr.vmem [resolvable:$true] %s1903
          %s1905 = sshll.u32 %s1902, 4
          %s1906 = int_to_ptr.hbm [resolvable:$true] %s1905
          %1911 = dma.vmem_to_hbm [thread:$0]  %s1904, 1024, %s1906, %s1884, 128, 256, 8
        $region148: #{tpu_custom_call.1} parent=115 // pred_fallthru
          _
        // Predicated region
        $region149: #{tpu_custom_call.1} parent=115 // pred_check
          %p1912 = pneg %p252
        $region150: #{tpu_custom_call.1} parent=115 // pred_check_branch
          %1914 = sbr.rel (%p1912) target = $region152
        $region151: #{tpu_custom_call.1} parent=115 // pred_region
          %1916 = vsyncadd %s1889, 0
          %s1917 = smul.addr %s32, 8
          %s1918 = scalar_lea.hbm %s8, %s1917
          %s1920 = sshll.u32 %s1892, 4
          %s1921 = int_to_ptr.vmem [resolvable:$true] %s1920
          %s1922 = sshll.u32 %s1918, 4
          %s1923 = int_to_ptr.hbm [resolvable:$true] %s1922
          %1925 = dma.vmem_to_hbm [thread:$0]  %s1921, 128, %s1923, %s1889
        $region152: #{tpu_custom_call.1} parent=115 // pred_fallthru
          _
      $region116: #{tpu_custom_call.1} parent=5 // pred_fallthru
        _
      %p1926 = scmp.le.s32.totalorder 2, %s23
      // Predicated region
      $region153: #{tpu_custom_call.1} parent=5 // pred_check
        %p1927 = pneg %p1926
      $region154: #{tpu_custom_call.1} parent=5 // pred_check_branch
        %1929 = sbr.rel (%p1927) target = $region156
      $region155: #{tpu_custom_call.1} parent=5 // pred_region
        %s1930 = ssub.s32 %s23, 2
        // Predicated region
        $region157: #{tpu_custom_call.1} parent=155 // pred_check
          %p1931 = pneg %p232
        $region158: #{tpu_custom_call.1} parent=155 // pred_check_branch
          %1933 = sbr.rel (%p1931) target = $region160
        $region159: #{tpu_custom_call.1} parent=155 // pred_region
          %s1934 = sand.u32 %s217, 1
          %s1935 = scalar_lea.sflag [#allocation8], %s1934
          %s1936 = sand.u32 %s217, 1
          %s1937 = smul.addr %s1936, 64
          %s1938 = scalar_lea.vmem [#allocation12], %s1937
          %1940 = dma.done %s1935, 1024
        $region160: #{tpu_custom_call.1} parent=155 // pred_fallthru
          _
        // Predicated region
        $region161: #{tpu_custom_call.1} parent=155 // pred_check
          %p1941 = pneg %p258
        $region162: #{tpu_custom_call.1} parent=155 // pred_check_branch
          %1943 = sbr.rel (%p1941) target = $region164
        $region163: #{tpu_custom_call.1} parent=155 // pred_region
          %s1944 = sand.u32 %s243, 1
          %s1945 = scalar_lea.sflag [#allocation14], %s1944
          %s1946 = sand.u32 %s243, 1
          %s1947 = smul.addr %s1946, 8
          %s1948 = scalar_lea.vmem [#allocation13], %s1947
          %1950 = dma.done %s1945, 128
        $region164: #{tpu_custom_call.1} parent=155 // pred_fallthru
          _
      $region156: #{tpu_custom_call.1} parent=5 // pred_fallthru
        _
    $region6: #{tpu_custom_call.1} parent=1 // loop_footer
      %s27 = sadd.s32 1, %s23
    $region7: #{tpu_custom_call.1} parent=1 // loop_footer_branch
      %22 = sbr.rel target = $region3
    $region8: #{tpu_custom_call.1} parent=1 // loop_exit
      _
    %1951 = vsyncpa [#allocation7], 1
    %s1952 = scalar_lea.sflag [#allocation7], 1
    %1953 = vsyncpa %s1952, 1
    %1954 = vsyncpa [#allocation10], 1
    %1955 = vsyncpa [#allocation8], 1
    %s1956 = scalar_lea.sflag [#allocation8], 1
    %1957 = vsyncpa %s1956, 1
    %1958 = vsyncpa [#allocation14], 1
    %s1959 = scalar_lea.sflag [#allocation14], 1
    %1960 = vsyncpa %s1959, 1

</llo_original>
